<compile_context>
chip_gen: v7x
topology: tpu7x:2x2x1
jax: 0.10.0
libtpu: 0.0.40
codegen_flags: <defaults>
</compile_context>

<pallas_src>
import jax
import jax.numpy as jnp
from jax.experimental import pallas as pl
from jax.experimental.pallas import tpu as pltpu

LN_EPS = 1e-5


# ---------- Stage 1: LayerNorm + fused proj -> q, k, and hoisted qw, kw ----------
def _ln_proj_kernel(x_ref, g_ref, beta_ref, w_ref, b_ref, wd_ref, bo_ref,
                    q_ref, k_ref, qw_ref, kw_ref):
    inner = q_ref.shape[-1]
    x = x_ref[0].astype(jnp.float32)                        # (TL, D)
    mean = jnp.mean(x, axis=-1, keepdims=True)
    msq = jnp.mean(x * x, axis=-1, keepdims=True)
    var = msq - mean * mean                                 # single-pass LN
    xn = (x - mean) * jax.lax.rsqrt(var + LN_EPS)
    s = xn * g_ref[...] + beta_ref[...]                     # (TL, D) f32
    s = s.astype(w_ref.dtype)                               # MXU operand dtype

    # One full-lane-width matmul (N = 2*inner = 128); split at the write.
    qk = jnp.dot(s, w_ref[...], preferred_element_type=jnp.float32) + b_ref[...]
    q = qk[:, :inner]                                       # (TL, I) f32
    k = qk[:, inner:]                                       # (TL, I) f32

    # Hoisted diff-branch projections: (q[j]-k[i]) @ W_diff = qw[j] - kw[i];
    # b_o is folded into qw.  Done once per sequence position, not per pair.
    qw = jnp.dot(q.astype(wd_ref.dtype), wd_ref[...],
                 preferred_element_type=jnp.float32) + bo_ref[...]   # (TL, P)
    kw = jnp.dot(k.astype(wd_ref.dtype), wd_ref[...],
                 preferred_element_type=jnp.float32)                 # (TL, P)

    q_ref[0] = q.astype(q_ref.dtype)
    k_ref[0] = k.astype(k_ref.dtype)
    qw_ref[0] = qw.astype(qw_ref.dtype)
    kw_ref[0] = kw.astype(kw_ref.dtype)


def ln_proj(x, gamma, beta, w_proj, b_proj, w_diff, b_o, *, inner, block_l):
    B, L, D = x.shape
    P = w_diff.shape[1]
    assert L % block_l == 0 and block_l % 8 == 0, (L, block_l)
    # q/k/qw/kw always f32: their HBM traffic is negligible vs the pair output,
    # and keeping them f32 avoids injecting bf16 error before the pairwise math.
    f32 = jnp.float32
    return pl.pallas_call(
        _ln_proj_kernel,
        out_shape=(jax.ShapeDtypeStruct((B, L, inner), f32),
                   jax.ShapeDtypeStruct((B, L, inner), f32),
                   jax.ShapeDtypeStruct((B, L, P), f32),
                   jax.ShapeDtypeStruct((B, L, P), f32)),
        grid_spec=pltpu.PrefetchScalarGridSpec(
            num_scalar_prefetch=0,
            grid=(B, L // block_l),
            in_specs=[
                pl.BlockSpec((1, block_l, D), lambda b, l: (b, l, 0)),
                pl.BlockSpec((1, D), lambda b, l: (0, 0)),
                pl.BlockSpec((1, D), lambda b, l: (0, 0)),
                pl.BlockSpec((D, 2 * inner), lambda b, l: (0, 0)),
                pl.BlockSpec((1, 2 * inner), lambda b, l: (0, 0)),
                pl.BlockSpec((inner, P), lambda b, l: (0, 0)),
                pl.BlockSpec((1, P), lambda b, l: (0, 0)),
            ],
            out_specs=[
                pl.BlockSpec((1, block_l, inner), lambda b, l: (b, l, 0)),
                pl.BlockSpec((1, block_l, inner), lambda b, l: (b, l, 0)),
                pl.BlockSpec((1, block_l, P), lambda b, l: (b, l, 0)),
                pl.BlockSpec((1, block_l, P), lambda b, l: (b, l, 0)),
            ],
        ),
        compiler_params=pltpu.CompilerParams(
            dimension_semantics=("parallel", "parallel")),
    )(x, gamma, beta, w_proj, b_proj, w_diff, b_o)


# --------------- Stage 2: tiled pairwise prod @ W_prod + qw[j] - kw[i] ------------
def _pair_kernel(q_ref, k_ref, qw_ref, kw_ref, wp_ref, o_ref):
    mxu_dtype = wp_ref.dtype
    q = q_ref[0].astype(mxu_dtype)                          # (TJ, I)
    k = k_ref[0].astype(mxu_dtype)                          # (TI, I)
    ti, inner = k.shape
    tj = q.shape[0]

    # Outer product directly in the MXU-operand dtype (bf16 on v6e/v7x halves
    # VALU passes and the VMEM temp; on v5e pass compute_dtype=f32: no bf16 VPU).
    # The reshape only collapses leading dims (last dim stays in lanes) -> free.
    prod = (k[:, None, :] * q[None, :, :]).reshape(ti * tj, inner)   # (TI*TJ, I)

    out = jnp.dot(prod, wp_ref[...], preferred_element_type=jnp.float32)
    out = out.reshape(ti, tj, -1)                           # (TI, TJ, P) f32

    # Single fused add + cast + store: hoisted diff branch (b_o already in qw).
    o_ref[0] = (out + qw_ref[0][None, :, :] - kw_ref[0][:, None, :]
                ).astype(o_ref.dtype)


def pairwise_oproj(q, k, qw, kw, w_prod, *, block_i, block_j, out_dtype,
                   vmem_limit_bytes):
    B, L, inner = q.shape
    P = w_prod.shape[1]
    assert L % block_i == 0 and block_i % 8 == 0, (L, block_i)
    assert L % block_j == 0 and block_j % 8 == 0, (L, block_j)
    return pl.pallas_call(
        _pair_kernel,
        out_shape=jax.ShapeDtypeStruct((B, L, L, P), out_dtype),
        grid_spec=pltpu.PrefetchScalarGridSpec(
            num_scalar_prefetch=0,
            grid=(B, L // block_i, L // block_j),
            in_specs=[
                # q / qw follow the inner j axis; k / kw and the weight keep a
                # constant block index across j so they stay resident.
                pl.BlockSpec((1, block_j, inner), lambda b, i, j: (b, j, 0)),
                pl.BlockSpec((1, block_i, inner), lambda b, i, j: (b, i, 0)),
                pl.BlockSpec((1, block_j, P), lambda b, i, j: (b, j, 0)),
                pl.BlockSpec((1, block_i, P), lambda b, i, j: (b, i, 0)),
                pl.BlockSpec((inner, P), lambda b, i, j: (0, 0)),
            ],
            out_specs=pl.BlockSpec((1, block_i, block_j, P),
                                   lambda b, i, j: (b, i, j, 0)),
        ),
        compiler_params=pltpu.CompilerParams(
            dimension_semantics=("parallel", "parallel", "parallel"),
            vmem_limit_bytes=vmem_limit_bytes),
    )(q, k, qw, kw, w_prod)


# ------------------------------------ wrapper -------------------------------------
def sequence_to_pair(x, params, inner_dim, *,
                     compute_dtype=jnp.float32, out_dtype=jnp.bfloat16,
                     block_l=None, block_i=None, block_j=None,
                     vmem_limit_bytes=64 * 1024 * 1024):
    B, L, D = x.shape
    block_l = min(L, 256) if block_l is None else block_l
    # Output-write-bound kernel: asymmetric tiles (small TI, long TJ) give long
    # contiguous TJ*P HBM write runs and fewer grid steps.  Kept modest enough
    # that the f32-output path still fits v7x's 64 MiB VMEM.
    block_i = min(L, 64) if block_i is None else block_i
    block_j = min(L, 256) if block_j is None else block_j

    # Split o_proj into prod/diff halves at the pallas_call boundary
    # (lane-clean split, no in-kernel slicing of W / concat of features).
    w_proj = params["w_proj"].astype(compute_dtype)
    b_proj = params["b_proj"].astype(jnp.float32)
    w_prod = params["w_o"][:inner_dim].astype(compute_dtype)
    w_diff = params["w_o"][inner_dim:].astype(compute_dtype)
    b_o = params["b_o"].astype(jnp.float32)

    q, k, qw, kw = ln_proj(x,
                           params["ln_gamma"].astype(jnp.float32),
                           params["ln_beta"].astype(jnp.float32),
                           w_proj, b_proj, w_diff, b_o,
                           inner=inner_dim, block_l=block_l)
    return pairwise_oproj(q, k, qw, kw, w_prod,
                          block_i=block_i, block_j=block_j,
                          out_dtype=out_dtype,
                          vmem_limit_bytes=vmem_limit_bytes)


def sequence_to_pair_ref(x, params, inner_dim):
    """Pure-JAX reference matching the PyTorch module exactly."""
    mean = x.mean(-1, keepdims=True)
    var = ((x - mean) ** 2).mean(-1, keepdims=True)
    s = (x - mean) / jnp.sqrt(var + LN_EPS)
    s = s * params["ln_gamma"][0] + params["ln_beta"][0]
    s = s @ params["w_proj"] + params["b_proj"][0]
    q, k = s[..., :inner_dim], s[..., inner_dim:]
    prod = q[:, None, :, :] * k[:, :, None, :]
    diff = q[:, None, :, :] - k[:, :, None, :]
    feat = jnp.concatenate([prod, diff], axis=-1)
    return feat @ params["w_o"] + params["b_o"][0]


if __name__ == "__main__":
    B, L = 2, 128
    sequence_state_dim, inner_dim, pairwise_state_dim = 64, 64, 128

    key = jax.random.PRNGKey(0)
    k_x, k_wp, k_wo, k_g, k_b, k_bp, k_bo = jax.random.split(key, 7)

    x = jax.random.normal(k_x, (B, L, sequence_state_dim), dtype=jnp.float32)

    # The module init zeroes the linear biases; small random values here purely
    # to exercise the bias / gamma / beta code paths in the kernels.
    params = {
        "ln_gamma": 1.0 + 0.1 * jax.random.normal(k_g, (1, sequence_state_dim), jnp.float32),
        "ln_beta": 0.1 * jax.random.normal(k_b, (1, sequence_state_dim), jnp.float32),
        "w_proj": 0.02 * jax.random.normal(
            k_wp, (sequence_state_dim, 2 * inner_dim), jnp.float32),
        "b_proj": 0.1 * jax.random.normal(k_bp, (1, 2 * inner_dim), jnp.float32),
        "w_o": 0.02 * jax.random.normal(
            k_wo, (2 * inner_dim, pairwise_state_dim), jnp.float32),
        "b_o": 0.1 * jax.random.normal(k_bo, (1, pairwise_state_dim), jnp.float32),
    }

    ref = sequence_to_pair_ref(x, params, inner_dim)

    # f32 compute / f32 output (bit-faithful to the module): strict check.
    out = sequence_to_pair(x, params, inner_dim,
                           compute_dtype=jnp.float32, out_dtype=jnp.float32)
    out = jax.block_until_ready(out)
    assert out.shape == (B, L, L, pairwise_state_dim), out.shape
    assert jnp.allclose(out, ref, atol=1e-4, rtol=1e-4), \
        float(jnp.max(jnp.abs(out - ref)))

    # Bandwidth-optimized path: bf16 MXU operands / bf16 output (q,k,qw,kw stay
    # f32 in HBM, cast only at the MXU): loose check.
    out_bf16 = sequence_to_pair(x, params, inner_dim,
                                compute_dtype=jnp.bfloat16,
                                out_dtype=jnp.bfloat16)
    out_bf16 = jax.block_until_ready(out_bf16).astype(jnp.float32)
    assert jnp.allclose(out_bf16, ref, atol=2e-2, rtol=2e-2), \
        float(jnp.max(jnp.abs(out_bf16 - ref)))

    print("KERNEL_OK")
</pallas_src>

<mosaic_0001>
module attributes {stable_mosaic.version = 11 : i64} {
  func.func @_ln_proj_kernel(%arg0: i32, %arg1: i32, %arg2: memref<1x128x64xf32, #tpu.memory_space<vmem>>, %arg3: memref<1x64xf32, #tpu.memory_space<vmem>>, %arg4: memref<1x64xf32, #tpu.memory_space<vmem>>, %arg5: memref<64x128xf32, #tpu.memory_space<vmem>>, %arg6: memref<1x128xf32, #tpu.memory_space<vmem>>, %arg7: memref<64x128xf32, #tpu.memory_space<vmem>>, %arg8: memref<1x128xf32, #tpu.memory_space<vmem>>, %arg9: memref<1x128x64xf32, #tpu.memory_space<vmem>>, %arg10: memref<1x128x64xf32, #tpu.memory_space<vmem>>, %arg11: memref<1x128x128xf32, #tpu.memory_space<vmem>>, %arg12: memref<1x128x128xf32, #tpu.memory_space<vmem>>) attributes {dimension_semantics = [#tpu.dimension_semantics<parallel>, #tpu.dimension_semantics<parallel>], iteration_bounds = array<i64: 2, 1>, scalar_prefetch = 0 : i64, scratch_operands = 0 : i64, tpu.core_type = #tpu.core_type<tc>, window_params = [{transform_indices = @transform_0, window_bounds = array<i64: 1, 128, 64>}, {pipeline_mode = #tpu.pipeline_mode<synchronous>, transform_indices = @transform_1, window_bounds = array<i64: 1, 64>}, {pipeline_mode = #tpu.pipeline_mode<synchronous>, transform_indices = @transform_2, window_bounds = array<i64: 1, 64>}, {pipeline_mode = #tpu.pipeline_mode<synchronous>, transform_indices = @transform_3, window_bounds = array<i64: 64, 128>}, {pipeline_mode = #tpu.pipeline_mode<synchronous>, transform_indices = @transform_4, window_bounds = array<i64: 1, 128>}, {pipeline_mode = #tpu.pipeline_mode<synchronous>, transform_indices = @transform_5, window_bounds = array<i64: 64, 128>}, {pipeline_mode = #tpu.pipeline_mode<synchronous>, transform_indices = @transform_6, window_bounds = array<i64: 1, 128>}, {transform_indices = @transform_7, window_bounds = array<i64: 1, 128, 64>}, {transform_indices = @transform_8, window_bounds = array<i64: 1, 128, 64>}, {transform_indices = @transform_9, window_bounds = array<i64: 1, 128, 128>}, {transform_indices = @transform_10, window_bounds = array<i64: 1, 128, 128>}]} {
    %c0 = arith.constant 0 : index
    %c0_0 = arith.constant 0 : index
    %c0_1 = arith.constant 0 : index
    %0 = vector.load %arg2[%c0, %c0_0, %c0_1] : memref<1x128x64xf32, #tpu.memory_space<vmem>>, vector<1x128x64xf32>
    %1 = vector.shape_cast %0 : vector<1x128x64xf32> to vector<128x64xf32>
    %cst = arith.constant dense<0.000000e+00> : vector<128xf32>
    %2 = vector.multi_reduction <add>, %1, %cst [1] : vector<128x64xf32> to vector<128xf32>
    %3 = vector.shape_cast %2 : vector<128xf32> to vector<128x1xf32>
    %cst_2 = arith.constant 6.400000e+01 : f32
    %4 = vector.broadcast %cst_2 : f32 to vector<128x1xf32>
    %5 = arith.divf %3, %4 : vector<128x1xf32>
    %6 = arith.mulf %1, %1 : vector<128x64xf32>
    %cst_3 = arith.constant dense<0.000000e+00> : vector<128xf32>
    %7 = vector.multi_reduction <add>, %6, %cst_3 [1] : vector<128x64xf32> to vector<128xf32>
    %8 = vector.shape_cast %7 : vector<128xf32> to vector<128x1xf32>
    %cst_4 = arith.constant 6.400000e+01 : f32
    %9 = vector.broadcast %cst_4 : f32 to vector<128x1xf32>
    %10 = arith.divf %8, %9 : vector<128x1xf32>
    %11 = arith.mulf %5, %5 : vector<128x1xf32>
    %12 = arith.subf %10, %11 : vector<128x1xf32>
    %13 = vector.broadcast %5 : vector<128x1xf32> to vector<128x64xf32>
    %14 = arith.subf %1, %13 : vector<128x64xf32>
    %cst_5 = arith.constant 9.99999974E-6 : f32
    %15 = vector.broadcast %cst_5 : f32 to vector<128x1xf32>
    %16 = arith.addf %12, %15 : vector<128x1xf32>
    %17 = math.rsqrt %16 : vector<128x1xf32>
    %18 = vector.broadcast %17 : vector<128x1xf32> to vector<128x64xf32>
    %19 = arith.mulf %14, %18 : vector<128x64xf32>
    %c0_6 = arith.constant 0 : index
    %c0_7 = arith.constant 0 : index
    %20 = vector.load %arg3[%c0_6, %c0_7] : memref<1x64xf32, #tpu.memory_space<vmem>>, vector<1x64xf32>
    %21 = vector.broadcast %20 : vector<1x64xf32> to vector<128x64xf32>
    %22 = arith.mulf %19, %21 : vector<128x64xf32>
    %c0_8 = arith.constant 0 : index
    %c0_9 = arith.constant 0 : index
    %23 = vector.load %arg4[%c0_8, %c0_9] : memref<1x64xf32, #tpu.memory_space<vmem>>, vector<1x64xf32>
    %24 = vector.broadcast %23 : vector<1x64xf32> to vector<128x64xf32>
    %25 = arith.addf %22, %24 : vector<128x64xf32>
    %c0_10 = arith.constant 0 : index
    %c0_11 = arith.constant 0 : index
    %26 = vector.load %arg5[%c0_10, %c0_11] : memref<64x128xf32, #tpu.memory_space<vmem>>, vector<64x128xf32>
    %cst_12 = arith.constant dense<0.000000e+00> : vector<128x128xf32>
    %27 = tpu.matmul %25, %26, %cst_12 {dimension_numbers = #tpu.dot_dimension_numbers<[1], [0], [0], [1], [0, 0, 1, 1], [], []>} : vector<128x64xf32>, vector<64x128xf32>, vector<128x128xf32> -> vector<128x128xf32>
    %c0_13 = arith.constant 0 : index
    %c0_14 = arith.constant 0 : index
    %28 = vector.load %arg6[%c0_13, %c0_14] : memref<1x128xf32, #tpu.memory_space<vmem>>, vector<1x128xf32>
    %29 = vector.broadcast %28 : vector<1x128xf32> to vector<128x128xf32>
    %30 = arith.addf %27, %29 : vector<128x128xf32>
    %31 = vector.extract_strided_slice %30 {offsets = [0, 0], sizes = [128, 64], strides = [1, 1]} : vector<128x128xf32> to vector<128x64xf32>
    %32 = vector.extract_strided_slice %30 {offsets = [0, 64], sizes = [128, 64], strides = [1, 1]} : vector<128x128xf32> to vector<128x64xf32>
    %c0_15 = arith.constant 0 : index
    %c0_16 = arith.constant 0 : index
    %33 = vector.load %arg7[%c0_15, %c0_16] : memref<64x128xf32, #tpu.memory_space<vmem>>, vector<64x128xf32>
    %cst_17 = arith.constant dense<0.000000e+00> : vector<128x128xf32>
    %34 = tpu.matmul %31, %33, %cst_17 {dimension_numbers = #tpu.dot_dimension_numbers<[1], [0], [0], [1], [0, 0, 1, 1], [], []>} : vector<128x64xf32>, vector<64x128xf32>, vector<128x128xf32> -> vector<128x128xf32>
    %c0_18 = arith.constant 0 : index
    %c0_19 = arith.constant 0 : index
    %35 = vector.load %arg8[%c0_18, %c0_19] : memref<1x128xf32, #tpu.memory_space<vmem>>, vector<1x128xf32>
    %36 = vector.broadcast %35 : vector<1x128xf32> to vector<128x128xf32>
    %37 = arith.addf %34, %36 : vector<128x128xf32>
    %c0_20 = arith.constant 0 : index
    %c0_21 = arith.constant 0 : index
    %38 = vector.load %arg7[%c0_20, %c0_21] : memref<64x128xf32, #tpu.memory_space<vmem>>, vector<64x128xf32>
    %cst_22 = arith.constant dense<0.000000e+00> : vector<128x128xf32>
    %39 = tpu.matmul %32, %38, %cst_22 {dimension_numbers = #tpu.dot_dimension_numbers<[1], [0], [0], [1], [0, 0, 1, 1], [], []>} : vector<128x64xf32>, vector<64x128xf32>, vector<128x128xf32> -> vector<128x128xf32>
    %c0_23 = arith.constant 0 : index
    %c0_24 = arith.constant 0 : index
    %c0_25 = arith.constant 0 : index
    %40 = vector.load %arg9[%c0_23, %c0_24, %c0_25] : memref<1x128x64xf32, #tpu.memory_space<vmem>>, vector<1x128x64xf32>
    %41 = vector.shape_cast %40 : vector<1x128x64xf32> to vector<128x64xf32>
    %42 = vector.shape_cast %31 : vector<128x64xf32> to vector<1x128x64xf32>
    tpu.vector_store %arg9[%c0_23, %c0_24, %c0_25], %42 {strides = array<i32>} : memref<1x128x64xf32, #tpu.memory_space<vmem>>, vector<1x128x64xf32>,
    %c0_26 = arith.constant 0 : index
    %c0_27 = arith.constant 0 : index
    %c0_28 = arith.constant 0 : index
    %43 = vector.load %arg10[%c0_26, %c0_27, %c0_28] : memref<1x128x64xf32, #tpu.memory_space<vmem>>, vector<1x128x64xf32>
    %44 = vector.shape_cast %43 : vector<1x128x64xf32> to vector<128x64xf32>
    %45 = vector.shape_cast %32 : vector<128x64xf32> to vector<1x128x64xf32>
    tpu.vector_store %arg10[%c0_26, %c0_27, %c0_28], %45 {strides = array<i32>} : memref<1x128x64xf32, #tpu.memory_space<vmem>>, vector<1x128x64xf32>,
    %c0_29 = arith.constant 0 : index
    %c0_30 = arith.constant 0 : index
    %c0_31 = arith.constant 0 : index
    %46 = vector.load %arg11[%c0_29, %c0_30, %c0_31] : memref<1x128x128xf32, #tpu.memory_space<vmem>>, vector<1x128x128xf32>
    %47 = vector.shape_cast %46 : vector<1x128x128xf32> to vector<128x128xf32>
    %48 = vector.shape_cast %37 : vector<128x128xf32> to vector<1x128x128xf32>
    tpu.vector_store %arg11[%c0_29, %c0_30, %c0_31], %48 {strides = array<i32>} : memref<1x128x128xf32, #tpu.memory_space<vmem>>, vector<1x128x128xf32>,
    %c0_32 = arith.constant 0 : index
    %c0_33 = arith.constant 0 : index
    %c0_34 = arith.constant 0 : index
    %49 = vector.load %arg12[%c0_32, %c0_33, %c0_34] : memref<1x128x128xf32, #tpu.memory_space<vmem>>, vector<1x128x128xf32>
    %50 = vector.shape_cast %49 : vector<1x128x128xf32> to vector<128x128xf32>
    %51 = vector.shape_cast %39 : vector<128x128xf32> to vector<1x128x128xf32>
    tpu.vector_store %arg12[%c0_32, %c0_33, %c0_34], %51 {strides = array<i32>} : memref<1x128x128xf32, #tpu.memory_space<vmem>>, vector<1x128x128xf32>,
    return
  }
  func.func @transform_0(%arg0: i32, %arg1: i32) -> (i32, i32, i32) {
    %c0_i32 = arith.constant 0 : i32
    %c0_i32_0 = arith.constant 0 : i32
    return %arg0, %arg1, %c0_i32 : i32, i32, i32
  }
  func.func @transform_1(%arg0: i32, %arg1: i32) -> (i32, i32) {
    %c0_i32 = arith.constant 0 : i32
    %c0_i32_0 = arith.constant 0 : i32
    %c0_i32_1 = arith.constant 0 : i32
    return %c0_i32, %c0_i32_0 : i32, i32
  }
  func.func @transform_2(%arg0: i32, %arg1: i32) -> (i32, i32) {
    %c0_i32 = arith.constant 0 : i32
    %c0_i32_0 = arith.constant 0 : i32
    %c0_i32_1 = arith.constant 0 : i32
    return %c0_i32, %c0_i32_0 : i32, i32
  }
  func.func @transform_3(%arg0: i32, %arg1: i32) -> (i32, i32) {
    %c0_i32 = arith.constant 0 : i32
    %c0_i32_0 = arith.constant 0 : i32
    %c0_i32_1 = arith.constant 0 : i32
    return %c0_i32, %c0_i32_0 : i32, i32
  }
  func.func @transform_4(%arg0: i32, %arg1: i32) -> (i32, i32) {
    %c0_i32 = arith.constant 0 : i32
    %c0_i32_0 = arith.constant 0 : i32
    %c0_i32_1 = arith.constant 0 : i32
    return %c0_i32, %c0_i32_0 : i32, i32
  }
  func.func @transform_5(%arg0: i32, %arg1: i32) -> (i32, i32) {
    %c0_i32 = arith.constant 0 : i32
    %c0_i32_0 = arith.constant 0 : i32
    %c0_i32_1 = arith.constant 0 : i32
    return %c0_i32, %c0_i32_0 : i32, i32
  }
  func.func @transform_6(%arg0: i32, %arg1: i32) -> (i32, i32) {
    %c0_i32 = arith.constant 0 : i32
    %c0_i32_0 = arith.constant 0 : i32
    %c0_i32_1 = arith.constant 0 : i32
    return %c0_i32, %c0_i32_0 : i32, i32
  }
  func.func @transform_7(%arg0: i32, %arg1: i32) -> (i32, i32, i32) {
    %c0_i32 = arith.constant 0 : i32
    %c0_i32_0 = arith.constant 0 : i32
    return %arg0, %arg1, %c0_i32 : i32, i32, i32
  }
  func.func @transform_8(%arg0: i32, %arg1: i32) -> (i32, i32, i32) {
    %c0_i32 = arith.constant 0 : i32
    %c0_i32_0 = arith.constant 0 : i32
    return %arg0, %arg1, %c0_i32 : i32, i32, i32
  }
  func.func @transform_9(%arg0: i32, %arg1: i32) -> (i32, i32, i32) {
    %c0_i32 = arith.constant 0 : i32
    %c0_i32_0 = arith.constant 0 : i32
    return %arg0, %arg1, %c0_i32 : i32, i32, i32
  }
  func.func @transform_10(%arg0: i32, %arg1: i32) -> (i32, i32, i32) {
    %c0_i32 = arith.constant 0 : i32
    %c0_i32_0 = arith.constant 0 : i32
    return %arg0, %arg1, %c0_i32 : i32, i32, i32
  }
}

</mosaic_0001>

<llo_original>
// kernel: tpu_custom_call.1
$region0: #{tpu_custom_call.1}
  #allocation0 [shape = 'u32[]', space=smem, size = 0x4, offset = 0x4, fixed_abs, tag = 'smem constant byte address 0x4 - core index']
  #allocation1 [shape = 'u32[144,128]{1,0:T(1,128)}', space=vmem, size = 0x12000, scoped, tag = 'internal scratch']
  %s0 = inlined_call_operand.vmem [shape: f32[2,128,64], index: 0, kind: input, shape index: {}]
  %s1 = inlined_call_operand.vmem [shape: f32[1,64], index: 1, kind: input, shape index: {}]
  %s2 = inlined_call_operand.vmem [shape: f32[1,64], index: 2, kind: input, shape index: {}]
  %s3 = inlined_call_operand.vmem [shape: f32[64,128], index: 3, kind: input, shape index: {}]
  %s4 = inlined_call_operand.vmem [shape: f32[1,128], index: 4, kind: input, shape index: {}]
  %s5 = inlined_call_operand.vmem [shape: f32[64,128], index: 5, kind: input, shape index: {}]
  %s6 = inlined_call_operand.vmem [shape: f32[1,128], index: 6, kind: input, shape index: {}]
  %s7 = inlined_call_operand.vmem [shape: f32[2,128,64], index: 7, kind: output, shape index: {0}]
  %s8 = inlined_call_operand.vmem [shape: f32[2,128,64], index: 8, kind: output, shape index: {1}]
  %s9 = inlined_call_operand.hbm [shape: f32[2,128,128], index: 9, kind: output, shape index: {2}]
  %s10 = inlined_call_operand.hbm [shape: f32[2,128,128], index: 10, kind: output, shape index: {3}]
  %11 = xla_tuple %s7, %s8, %s9, %s10
  %s12 = sld [smem:[#allocation0]]
  $region85: #{tpu_custom_call.1} parent=0
    _
  %s14 = ssub.s32 1, %s12
  %s15 = scalar_select 0, %s14, %s12
  $region1: #{tpu_custom_call.1} parent=0
    #allocation2 [shape = 'u8[131072]{0}', space=vmem, size = 0x20000, scoped, tag = 'output window, operand 2']
    #allocation3 [shape = 's32[2]{0}', space=sflag, size = 0x8, scoped, tag = 'scoped memory for tpu_custom_call.1']
    #allocation4 [shape = 'u8[131072]{0}', space=vmem, size = 0x20000, scoped, tag = 'output window, operand 3']
    #allocation5 [shape = 's32[2]{0}', space=sflag, size = 0x8, scoped, tag = 'scoped memory for tpu_custom_call.1']
    %16 = vsyncpa [#allocation3], 0
    %s17 = scalar_lea.sflag [#allocation3], 1
    %18 = vsyncpa %s17, 0
    %19 = vsyncpa [#allocation5], 0
    %s20 = scalar_lea.sflag [#allocation5], 1
    %21 = vsyncpa %s20, 0
    loop: start=0, step=1, limit=4
    $region2: #{tpu_custom_call.1} parent=1 // loop_pre_header
      _
    $region3: #{tpu_custom_call.1} parent=1 // loop_header
      %s23 = sphi 0, %s27
      %p24 = scmp.ge.s32.totalorder %s23, 4
      %s30 = sphi 0, %s42
      %s31 = sphi 0, %s38
      %s32 = sphi 0, %s30
      %s33 = sphi 0, %s31
      %s34 = sphi 0, %s32
      %s35 = sphi 0, %s33
      %s47 = sphi 0, %s49
      %s50 = sphi 0, %s47
      %s51 = sphi 0, %s50
      %s67 = sphi 0, %s51
      %s71 = sphi 0, %s71
      %s73 = sphi 0, %s71
      %s74 = sphi 0, %s73
      %s88 = sphi 0, %s74
      %s92 = sphi 0, %s92
      %s94 = sphi 0, %s92
      %s95 = sphi 0, %s94
      %s109 = sphi 0, %s95
      %s113 = sphi 0, %s113
      %s115 = sphi 0, %s113
      %s116 = sphi 0, %s115
      %s130 = sphi 0, %s116
      %s134 = sphi 0, %s134
      %s136 = sphi 0, %s134
      %s137 = sphi 0, %s136
      %s151 = sphi 0, %s137
      %s155 = sphi 0, %s155
      %s157 = sphi 0, %s155
      %s158 = sphi 0, %s157
      %s172 = sphi 0, %s158
      %s176 = sphi 0, %s176
      %s178 = sphi 0, %s176
      %s179 = sphi 0, %s178
      %s193 = sphi 0, %s179
      %s201 = sphi 0, %s203
      %s204 = sphi 0, %s201
      %s205 = sphi 0, %s204
      %s221 = sphi 0, %s205
      %s229 = sphi 0, %s231
      %s232 = sphi 0, %s229
      %s233 = sphi 0, %s232
      %s249 = sphi 0, %s233
      %s257 = sphi 0, %s259
      %s260 = sphi 0, %s257
      %s261 = sphi 0, %s260
      %s277 = sphi 0, %s261
      %s285 = sphi 0, %s287
      %s288 = sphi 0, %s285
      %s289 = sphi 0, %s288
      %s305 = sphi 0, %s289
    $region4: #{tpu_custom_call.1} parent=1 // loop_header_branch
      %26 = sbr.rel (%p24) target = $region8
    $region5: #{tpu_custom_call.1} parent=1 // loop_body
      %s28 = ssub.s32 %s23, 1
      %s29 = ssub.s32 %s23, 2
      %s36 = sadd.s32 1, %s31
      %p37 = scmp.ge.s32.totalorder %s36, 1
      %s38 = scalar_select %p37, 0, %s36
      %s39 = sadd.s32 1, %s30
      %s40 = scalar_select %p37, %s39, %s30
      %p41 = scmp.ge.s32.totalorder %s40, 2
      %s42 = scalar_select %p41, 0, %s40
      %s43 = ssub.s32 %s30, %s42
      %s44 = ssub.s32 %s31, %s38
      %s45 = sor.u32 %s43, %s44
      %p46 = scmp.eq.s32.totalorder %s45, 0
      %s48 = sadd.s32 %s47, 1
      %s49 = scalar_select %p46, %s47, %s48
      %p52 = pneg %p46
      %p53 = scmp.eq.s32.totalorder %s23, 1
      %p54 = por %p52, %p53
      %p55 = scmp.ne.s32.totalorder %s47, %s50
      %p56 = scmp.eq.s32.totalorder %s23, 0
      %p57 = por %p55, %p56
      %p58 = scmp.ne.s32.totalorder %s47, %s50
      %p59 = scmp.eq.s32.totalorder %s28, 1
      %p60 = por %p58, %p59
      %p61 = scmp.ne.s32.totalorder %s50, %s51
      %p62 = scmp.eq.s32.totalorder %s28, 0
      %p63 = por %p61, %p62
      %p64 = scmp.ne.s32.totalorder %s50, %s51
      %p65 = scmp.eq.s32.totalorder %s29, 1
      %p66 = por %p64, %p65
      %p68 = scmp.ne.s32.totalorder %s51, %s67
      %p69 = scmp.eq.s32.totalorder %s29, 0
      %p70 = por %p68, %p69
      %s72 = sadd.s32 %s71, 1
      %p75 = scmp.eq.s32.totalorder %s23, 1
      %p76 = scmp.ne.s32.totalorder %s71, %s73
      %p77 = scmp.eq.s32.totalorder %s23, 0
      %p78 = por %p76, %p77
      %p79 = scmp.ne.s32.totalorder %s71, %s73
      %p80 = scmp.eq.s32.totalorder %s28, 1
      %p81 = por %p79, %p80
      %p82 = scmp.ne.s32.totalorder %s73, %s74
      %p83 = scmp.eq.s32.totalorder %s28, 0
      %p84 = por %p82, %p83
      %p85 = scmp.ne.s32.totalorder %s73, %s74
      %p86 = scmp.eq.s32.totalorder %s29, 1
      %p87 = por %p85, %p86
      %p89 = scmp.ne.s32.totalorder %s74, %s88
      %p90 = scmp.eq.s32.totalorder %s29, 0
      %p91 = por %p89, %p90
      %s93 = sadd.s32 %s92, 1
      %p96 = scmp.eq.s32.totalorder %s23, 1
      %p97 = scmp.ne.s32.totalorder %s92, %s94
      %p98 = scmp.eq.s32.totalorder %s23, 0
      %p99 = por %p97, %p98
      %p100 = scmp.ne.s32.totalorder %s92, %s94
      %p101 = scmp.eq.s32.totalorder %s28, 1
      %p102 = por %p100, %p101
      %p103 = scmp.ne.s32.totalorder %s94, %s95
      %p104 = scmp.eq.s32.totalorder %s28, 0
      %p105 = por %p103, %p104
      %p106 = scmp.ne.s32.totalorder %s94, %s95
      %p107 = scmp.eq.s32.totalorder %s29, 1
      %p108 = por %p106, %p107
      %p110 = scmp.ne.s32.totalorder %s95, %s109
      %p111 = scmp.eq.s32.totalorder %s29, 0
      %p112 = por %p110, %p111
      %s114 = sadd.s32 %s113, 1
      %p117 = scmp.eq.s32.totalorder %s23, 1
      %p118 = scmp.ne.s32.totalorder %s113, %s115
      %p119 = scmp.eq.s32.totalorder %s23, 0
      %p120 = por %p118, %p119
      %p121 = scmp.ne.s32.totalorder %s113, %s115
      %p122 = scmp.eq.s32.totalorder %s28, 1
      %p123 = por %p121, %p122
      %p124 = scmp.ne.s32.totalorder %s115, %s116
      %p125 = scmp.eq.s32.totalorder %s28, 0
      %p126 = por %p124, %p125
      %p127 = scmp.ne.s32.totalorder %s115, %s116
      %p128 = scmp.eq.s32.totalorder %s29, 1
      %p129 = por %p127, %p128
      %p131 = scmp.ne.s32.totalorder %s116, %s130
      %p132 = scmp.eq.s32.totalorder %s29, 0
      %p133 = por %p131, %p132
      %s135 = sadd.s32 %s134, 1
      %p138 = scmp.eq.s32.totalorder %s23, 1
      %p139 = scmp.ne.s32.totalorder %s134, %s136
      %p140 = scmp.eq.s32.totalorder %s23, 0
      %p141 = por %p139, %p140
      %p142 = scmp.ne.s32.totalorder %s134, %s136
      %p143 = scmp.eq.s32.totalorder %s28, 1
      %p144 = por %p142, %p143
      %p145 = scmp.ne.s32.totalorder %s136, %s137
      %p146 = scmp.eq.s32.totalorder %s28, 0
      %p147 = por %p145, %p146
      %p148 = scmp.ne.s32.totalorder %s136, %s137
      %p149 = scmp.eq.s32.totalorder %s29, 1
      %p150 = por %p148, %p149
      %p152 = scmp.ne.s32.totalorder %s137, %s151
      %p153 = scmp.eq.s32.totalorder %s29, 0
      %p154 = por %p152, %p153
      %s156 = sadd.s32 %s155, 1
      %p159 = scmp.eq.s32.totalorder %s23, 1
      %p160 = scmp.ne.s32.totalorder %s155, %s157
      %p161 = scmp.eq.s32.totalorder %s23, 0
      %p162 = por %p160, %p161
      %p163 = scmp.ne.s32.totalorder %s155, %s157
      %p164 = scmp.eq.s32.totalorder %s28, 1
      %p165 = por %p163, %p164
      %p166 = scmp.ne.s32.totalorder %s157, %s158
      %p167 = scmp.eq.s32.totalorder %s28, 0
      %p168 = por %p166, %p167
      %p169 = scmp.ne.s32.totalorder %s157, %s158
      %p170 = scmp.eq.s32.totalorder %s29, 1
      %p171 = por %p169, %p170
      %p173 = scmp.ne.s32.totalorder %s158, %s172
      %p174 = scmp.eq.s32.totalorder %s29, 0
      %p175 = por %p173, %p174
      %s177 = sadd.s32 %s176, 1
      %p180 = scmp.eq.s32.totalorder %s23, 1
      %p181 = scmp.ne.s32.totalorder %s176, %s178
      %p182 = scmp.eq.s32.totalorder %s23, 0
      %p183 = por %p181, %p182
      %p184 = scmp.ne.s32.totalorder %s176, %s178
      %p185 = scmp.eq.s32.totalorder %s28, 1
      %p186 = por %p184, %p185
      %p187 = scmp.ne.s32.totalorder %s178, %s179
      %p188 = scmp.eq.s32.totalorder %s28, 0
      %p189 = por %p187, %p188
      %p190 = scmp.ne.s32.totalorder %s178, %s179
      %p191 = scmp.eq.s32.totalorder %s29, 1
      %p192 = por %p190, %p191
      %p194 = scmp.ne.s32.totalorder %s179, %s193
      %p195 = scmp.eq.s32.totalorder %s29, 0
      %p196 = por %p194, %p195
      %s197 = ssub.s32 %s30, %s42
      %s198 = ssub.s32 %s31, %s38
      %s199 = sor.u32 %s197, %s198
      %p200 = scmp.eq.s32.totalorder %s199, 0
      %s202 = sadd.s32 %s201, 1
      %s203 = scalar_select %p200, %s201, %s202
      %p206 = pneg %p200
      %p207 = scmp.eq.s32.totalorder %s23, 1
      %p208 = por %p206, %p207
      %p209 = scmp.ne.s32.totalorder %s201, %s204
      %p210 = scmp.eq.s32.totalorder %s23, 0
      %p211 = por %p209, %p210
      %p212 = scmp.ne.s32.totalorder %s201, %s204
      %p213 = scmp.eq.s32.totalorder %s28, 1
      %p214 = por %p212, %p213
      %p215 = scmp.ne.s32.totalorder %s204, %s205
      %p216 = scmp.eq.s32.totalorder %s28, 0
      %p217 = por %p215, %p216
      %p218 = scmp.ne.s32.totalorder %s204, %s205
      %p219 = scmp.eq.s32.totalorder %s29, 1
      %p220 = por %p218, %p219
      %p222 = scmp.ne.s32.totalorder %s205, %s221
      %p223 = scmp.eq.s32.totalorder %s29, 0
      %p224 = por %p222, %p223
      %s225 = ssub.s32 %s30, %s42
      %s226 = ssub.s32 %s31, %s38
      %s227 = sor.u32 %s225, %s226
      %p228 = scmp.eq.s32.totalorder %s227, 0
      %s230 = sadd.s32 %s229, 1
      %s231 = scalar_select %p228, %s229, %s230
      %p234 = pneg %p228
      %p235 = scmp.eq.s32.totalorder %s23, 1
      %p236 = por %p234, %p235
      %p237 = scmp.ne.s32.totalorder %s229, %s232
      %p238 = scmp.eq.s32.totalorder %s23, 0
      %p239 = por %p237, %p238
      %p240 = scmp.ne.s32.totalorder %s229, %s232
      %p241 = scmp.eq.s32.totalorder %s28, 1
      %p242 = por %p240, %p241
      %p243 = scmp.ne.s32.totalorder %s232, %s233
      %p244 = scmp.eq.s32.totalorder %s28, 0
      %p245 = por %p243, %p244
      %p246 = scmp.ne.s32.totalorder %s232, %s233
      %p247 = scmp.eq.s32.totalorder %s29, 1
      %p248 = por %p246, %p247
      %p250 = scmp.ne.s32.totalorder %s233, %s249
      %p251 = scmp.eq.s32.totalorder %s29, 0
      %p252 = por %p250, %p251
      %s253 = ssub.s32 %s30, %s42
      %s254 = ssub.s32 %s31, %s38
      %s255 = sor.u32 %s253, %s254
      %p256 = scmp.eq.s32.totalorder %s255, 0
      %s258 = sadd.s32 %s257, 1
      %s259 = scalar_select %p256, %s257, %s258
      %p262 = pneg %p256
      %p263 = scmp.eq.s32.totalorder %s23, 1
      %p264 = por %p262, %p263
      %p265 = scmp.ne.s32.totalorder %s257, %s260
      %p266 = scmp.eq.s32.totalorder %s23, 0
      %p267 = por %p265, %p266
      %p268 = scmp.ne.s32.totalorder %s257, %s260
      %p269 = scmp.eq.s32.totalorder %s28, 1
      %p270 = por %p268, %p269
      %p271 = scmp.ne.s32.totalorder %s260, %s261
      %p272 = scmp.eq.s32.totalorder %s28, 0
      %p273 = por %p271, %p272
      %p274 = scmp.ne.s32.totalorder %s260, %s261
      %p275 = scmp.eq.s32.totalorder %s29, 1
      %p276 = por %p274, %p275
      %p278 = scmp.ne.s32.totalorder %s261, %s277
      %p279 = scmp.eq.s32.totalorder %s29, 0
      %p280 = por %p278, %p279
      %s281 = ssub.s32 %s30, %s42
      %s282 = ssub.s32 %s31, %s38
      %s283 = sor.u32 %s281, %s282
      %p284 = scmp.eq.s32.totalorder %s283, 0
      %s286 = sadd.s32 %s285, 1
      %s287 = scalar_select %p284, %s285, %s286
      %p290 = pneg %p284
      %p291 = scmp.eq.s32.totalorder %s23, 1
      %p292 = por %p290, %p291
      %p293 = scmp.ne.s32.totalorder %s285, %s288
      %p294 = scmp.eq.s32.totalorder %s23, 0
      %p295 = por %p293, %p294
      %p296 = scmp.ne.s32.totalorder %s285, %s288
      %p297 = scmp.eq.s32.totalorder %s28, 1
      %p298 = por %p296, %p297
      %p299 = scmp.ne.s32.totalorder %s288, %s289
      %p300 = scmp.eq.s32.totalorder %s28, 0
      %p301 = por %p299, %p300
      %p302 = scmp.ne.s32.totalorder %s288, %s289
      %p303 = scmp.eq.s32.totalorder %s29, 1
      %p304 = por %p302, %p303
      %p306 = scmp.ne.s32.totalorder %s289, %s305
      %p307 = scmp.eq.s32.totalorder %s29, 0
      %p308 = por %p306, %p307
      %p309 = scmp.le.s32.totalorder 1, %s23
      %p310 = scmp.lt.s32.totalorder %s23, 3
      %p311 = pnand %p309, %p310
      %p312 = pneg %p311
      // Predicated region
      $region9: #{tpu_custom_call.1} parent=5 // pred_check
        _
      $region10: #{tpu_custom_call.1} parent=5 // pred_check_branch
        %314 = sbr.rel (%p311) target = $region12
      $region11: #{tpu_custom_call.1} parent=5 // pred_region
        %s315 = ssub.s32 %s23, 1
        // Predicated region
        $region13: #{tpu_custom_call.1} parent=11 // pred_check
          %p316 = pneg %p84
        $region14: #{tpu_custom_call.1} parent=11 // pred_check_branch
          %318 = sbr.rel (%p316) target = $region16
        $region15: #{tpu_custom_call.1} parent=11 // pred_region
          _
        $region16: #{tpu_custom_call.1} parent=11 // pred_fallthru
          _
        // Predicated region
        $region17: #{tpu_custom_call.1} parent=11 // pred_check
          %p319 = pneg %p105
        $region18: #{tpu_custom_call.1} parent=11 // pred_check_branch
          %321 = sbr.rel (%p319) target = $region20
        $region19: #{tpu_custom_call.1} parent=11 // pred_region
          _
        $region20: #{tpu_custom_call.1} parent=11 // pred_fallthru
          _
        // Predicated region
        $region21: #{tpu_custom_call.1} parent=11 // pred_check
          %p322 = pneg %p126
        $region22: #{tpu_custom_call.1} parent=11 // pred_check_branch
          %324 = sbr.rel (%p322) target = $region24
        $region23: #{tpu_custom_call.1} parent=11 // pred_region
          _
        $region24: #{tpu_custom_call.1} parent=11 // pred_fallthru
          _
        // Predicated region
        $region25: #{tpu_custom_call.1} parent=11 // pred_check
          %p325 = pneg %p147
        $region26: #{tpu_custom_call.1} parent=11 // pred_check_branch
          %327 = sbr.rel (%p325) target = $region28
        $region27: #{tpu_custom_call.1} parent=11 // pred_region
          _
        $region28: #{tpu_custom_call.1} parent=11 // pred_fallthru
          _
        // Predicated region
        $region29: #{tpu_custom_call.1} parent=11 // pred_check
          %p328 = pneg %p168
        $region30: #{tpu_custom_call.1} parent=11 // pred_check_branch
          %330 = sbr.rel (%p328) target = $region32
        $region31: #{tpu_custom_call.1} parent=11 // pred_region
          _
        $region32: #{tpu_custom_call.1} parent=11 // pred_fallthru
          _
        // Predicated region
        $region33: #{tpu_custom_call.1} parent=11 // pred_check
          %p331 = pneg %p189
        $region34: #{tpu_custom_call.1} parent=11 // pred_check_branch
          %333 = sbr.rel (%p331) target = $region36
        $region35: #{tpu_custom_call.1} parent=11 // pred_region
          _
        $region36: #{tpu_custom_call.1} parent=11 // pred_fallthru
          _
      $region12: #{tpu_custom_call.1} parent=5 // pred_fallthru
        _
      %p334 = scmp.lt.s32.totalorder %s23, 2
      // Predicated region
      $region37: #{tpu_custom_call.1} parent=5 // pred_check
        %p335 = pneg %p334
      $region38: #{tpu_custom_call.1} parent=5 // pred_check_branch
        %337 = sbr.rel (%p335) target = $region40
      $region39: #{tpu_custom_call.1} parent=5 // pred_region
        // Predicated region
        $region41: #{tpu_custom_call.1} parent=39 // pred_check
          %p338 = pneg %p57
        $region42: #{tpu_custom_call.1} parent=39 // pred_check_branch
          %340 = sbr.rel (%p338) target = $region44
        $region43: #{tpu_custom_call.1} parent=39 // pred_region
          %s341 = smul.u32 16, %s31
          %p342 = scmp.lt.s32.totalorder %s30, 1
          %s343 = scalar_select %p342, %s30, 1
          %p344 = scmp.lt.s32.totalorder %s341, 15
          %s345 = scalar_select %p344, %s341, 15
          %s346 = smul.addr %s343, 16
          %s347 = sadd.s32 %s345, %s346
          %s348 = smul.addr %s347, 8
          %s349 = scalar_lea.vmem %s0, %s348
          %s350 = smul.u32 16, %s31
        $region44: #{tpu_custom_call.1} parent=39 // pred_fallthru
          _
      $region40: #{tpu_custom_call.1} parent=5 // pred_fallthru
        _
      %p351 = scmp.le.s32.totalorder 1, %s23
      %p352 = scmp.lt.s32.totalorder %s23, 3
      %p353 = pnand %p351, %p352
      %p354 = pneg %p353
      // Predicated region
      $region45: #{tpu_custom_call.1} parent=5 // pred_check
        _
      $region46: #{tpu_custom_call.1} parent=5 // pred_check_branch
        %356 = sbr.rel (%p353) target = $region48
      $region47: #{tpu_custom_call.1} parent=5 // pred_region
        %s357 = ssub.s32 %s23, 1
        %s358 = smul.u32 16, %s33
        %p359 = scmp.lt.s32.totalorder %s32, 1
        %s360 = scalar_select %p359, %s32, 1
        %p361 = scmp.lt.s32.totalorder %s358, 15
        %s362 = scalar_select %p361, %s358, 15
        %s363 = smul.addr %s360, 16
        %s364 = sadd.s32 %s362, %s363
        %s365 = smul.addr %s364, 8
        %s366 = scalar_lea.vmem %s0, %s365
        %p367 = pneg %p63
        %p368 = pneg %p60
        %p369 = pneg %p84
        %p370 = pneg %p81
        %p371 = pneg %p105
        %p372 = pneg %p102
        %p373 = pneg %p126
        %p374 = pneg %p123
        %p375 = pneg %p147
        %p376 = pneg %p144
        %p377 = pneg %p168
        %p378 = pneg %p165
        %p379 = pneg %p189
        %p380 = pneg %p186
        %p381 = pneg %p217
        %p382 = pneg %p214
        %s383 = smul.u32 16, %s33
        %p384 = scmp.lt.s32.totalorder %s32, 1
        %s385 = scalar_select %p384, %s32, 1
        %p386 = scmp.lt.s32.totalorder %s383, 15
        %s387 = scalar_select %p386, %s383, 15
        %s388 = smul.addr %s385, 16
        %s389 = sadd.s32 %s387, %s388
        %s390 = smul.addr %s389, 8
        %s391 = scalar_lea.vmem %s7, %s390
        %p392 = pneg %p245
        %p393 = pneg %p242
        %s394 = smul.u32 16, %s33
        %p395 = scmp.lt.s32.totalorder %s32, 1
        %s396 = scalar_select %p395, %s32, 1
        %p397 = scmp.lt.s32.totalorder %s394, 15
        %s398 = scalar_select %p397, %s394, 15
        %s399 = smul.addr %s396, 16
        %s400 = sadd.s32 %s398, %s399
        %s401 = smul.addr %s400, 8
        %s402 = scalar_lea.vmem %s8, %s401
        %p403 = pneg %p273
        %p404 = pneg %p270
        %s405 = sand.u32 %s260, 1
        %s406 = scalar_lea.sflag [#allocation3], %s405
        %s407 = sand.u32 %s260, 1
        %s408 = smul.addr %s407, 128
        %s409 = scalar_lea.vmem [#allocation2], %s408
        %p410 = pneg %p301
        %p411 = pneg %p298
        %s412 = sand.u32 %s288, 1
        %s413 = scalar_lea.sflag [#allocation5], %s412
        %s414 = sand.u32 %s288, 1
        %s415 = smul.addr %s414, 128
        %s416 = scalar_lea.vmem [#allocation4], %s415
        %s417 = smul.u32 16, %s33
        %p418 = scmp.lt.s32.totalorder %s32, 1
        %s419 = scalar_select %p418, %s32, 1
        %p420 = scmp.lt.s32.totalorder %s417, 15
        %s421 = scalar_select %p420, %s417, 15
        %s422 = smul.addr %s419, 16
        %s423 = sadd.s32 %s421, %s422
        %s424 = smul.addr %s423, 8
        %s425 = scalar_lea.vmem %s0, %s424
        %s426 = smul.u32 16, %s33
        %s427 = smul.u32 16, %s33
        %p428 = scmp.lt.s32.totalorder %s32, 1
        %s429 = scalar_select %p428, %s32, 1
        %p430 = scmp.lt.s32.totalorder %s427, 15
        %s431 = scalar_select %p430, %s427, 15
        %s432 = smul.addr %s429, 16
        %s433 = sadd.s32 %s431, %s432
        %s434 = smul.addr %s433, 8
        %s435 = scalar_lea.vmem %s7, %s434
        %s436 = smul.u32 16, %s33
        %s437 = smul.u32 16, %s33
        %p438 = scmp.lt.s32.totalorder %s32, 1
        %s439 = scalar_select %p438, %s32, 1
        %p440 = scmp.lt.s32.totalorder %s437, 15
        %s441 = scalar_select %p440, %s437, 15
        %s442 = smul.addr %s439, 16
        %s443 = sadd.s32 %s441, %s442
        %s444 = smul.addr %s443, 8
        %s445 = scalar_lea.vmem %s8, %s444
        %s446 = smul.u32 16, %s33
        %s447 = smul.u32 16, %s33
        %s448 = smul.u32 16, %s33
        %v449 = vld [vmem:[%s425] sm:$0xff]
        %v450 = vld [vmem:[%s425 + $0x8] sm:$0xff]
        %v451 = vld [vmem:[%s425 + $0x10] sm:$0xff]
        %v452 = vld [vmem:[%s425 + $0x18] sm:$0xff]
        %v453 = vld [vmem:[%s425 + $0x20] sm:$0xff]
        %v454 = vld [vmem:[%s425 + $0x28] sm:$0xff]
        %v455 = vld [vmem:[%s425 + $0x30] sm:$0xff]
        %v456 = vld [vmem:[%s425 + $0x38] sm:$0xff]
        %v457 = vld [vmem:[%s425 + $0x40] sm:$0xff]
        %v458 = vld [vmem:[%s425 + $0x48] sm:$0xff]
        %v459 = vld [vmem:[%s425 + $0x50] sm:$0xff]
        %v460 = vld [vmem:[%s425 + $0x58] sm:$0xff]
        %v461 = vld [vmem:[%s425 + $0x60] sm:$0xff]
        %v462 = vld [vmem:[%s425 + $0x68] sm:$0xff]
        %v463 = vld [vmem:[%s425 + $0x70] sm:$0xff]
        %v464 = vld [vmem:[%s425 + $0x78] sm:$0xff]
        %vm465 = vcmask 523264
        %v466 = vsel %vm465, %v449, 0.0
        %467 = vadd.xlane.f32.xlu0 %v466
        %v468 = vpop.xlane.xlu0 %467
        %v469 = vsel %vm465, %v450, 0.0
        %470 = vadd.xlane.f32.xlu0 %v469
        %v471 = vpop.xlane.xlu0 %470
        %v472 = vsel %vm465, %v451, 0.0
        %473 = vadd.xlane.f32.xlu0 %v472
        %v474 = vpop.xlane.xlu0 %473
        %v475 = vsel %vm465, %v452, 0.0
        %476 = vadd.xlane.f32.xlu0 %v475
        %v477 = vpop.xlane.xlu0 %476
        %v478 = vsel %vm465, %v453, 0.0
        %479 = vadd.xlane.f32.xlu0 %v478
        %v480 = vpop.xlane.xlu0 %479
        %v481 = vsel %vm465, %v454, 0.0
        %482 = vadd.xlane.f32.xlu0 %v481
        %v483 = vpop.xlane.xlu0 %482
        %v484 = vsel %vm465, %v455, 0.0
        %485 = vadd.xlane.f32.xlu0 %v484
        %v486 = vpop.xlane.xlu0 %485
        %v487 = vsel %vm465, %v456, 0.0
        %488 = vadd.xlane.f32.xlu0 %v487
        %v489 = vpop.xlane.xlu0 %488
        %v490 = vsel %vm465, %v457, 0.0
        %491 = vadd.xlane.f32.xlu0 %v490
        %v492 = vpop.xlane.xlu0 %491
        %v493 = vsel %vm465, %v458, 0.0
        %494 = vadd.xlane.f32.xlu0 %v493
        %v495 = vpop.xlane.xlu0 %494
        %v496 = vsel %vm465, %v459, 0.0
        %497 = vadd.xlane.f32.xlu0 %v496
        %v498 = vpop.xlane.xlu0 %497
        %v499 = vsel %vm465, %v460, 0.0
        %500 = vadd.xlane.f32.xlu0 %v499
        %v501 = vpop.xlane.xlu0 %500
        %v502 = vsel %vm465, %v461, 0.0
        %503 = vadd.xlane.f32.xlu0 %v502
        %v504 = vpop.xlane.xlu0 %503
        %v505 = vsel %vm465, %v462, 0.0
        %506 = vadd.xlane.f32.xlu0 %v505
        %v507 = vpop.xlane.xlu0 %506
        %v508 = vsel %vm465, %v463, 0.0
        %509 = vadd.xlane.f32.xlu0 %v508
        %v510 = vpop.xlane.xlu0 %509
        %v511 = vsel %vm465, %v464, 0.0
        %512 = vadd.xlane.f32.xlu0 %v511
        %v513 = vpop.xlane.xlu0 %512
        %v514 = vrcp.pop 64.0
        %v515 = vmul.f32 %v468, %v514
        %v516 = vmul.f32 %v471, %v514
        %v517 = vmul.f32 %v474, %v514
        %v518 = vmul.f32 %v477, %v514
        %v519 = vmul.f32 %v480, %v514
        %v520 = vmul.f32 %v483, %v514
        %v521 = vmul.f32 %v486, %v514
        %v522 = vmul.f32 %v489, %v514
        %v523 = vmul.f32 %v492, %v514
        %v524 = vmul.f32 %v495, %v514
        %v525 = vmul.f32 %v498, %v514
        %v526 = vmul.f32 %v501, %v514
        %v527 = vmul.f32 %v504, %v514
        %v528 = vmul.f32 %v507, %v514
        %v529 = vmul.f32 %v510, %v514
        %v530 = vmul.f32 %v513, %v514
        %v531 = vmul.f32 %v449, %v449
        %v532 = vmul.f32 %v450, %v450
        %v533 = vmul.f32 %v451, %v451
        %v534 = vmul.f32 %v452, %v452
        %v535 = vmul.f32 %v453, %v453
        %v536 = vmul.f32 %v454, %v454
        %v537 = vmul.f32 %v455, %v455
        %v538 = vmul.f32 %v456, %v456
        %v539 = vmul.f32 %v457, %v457
        %v540 = vmul.f32 %v458, %v458
        %v541 = vmul.f32 %v459, %v459
        %v542 = vmul.f32 %v460, %v460
        %v543 = vmul.f32 %v461, %v461
        %v544 = vmul.f32 %v462, %v462
        %v545 = vmul.f32 %v463, %v463
        %v546 = vmul.f32 %v464, %v464
        %v547 = vsel %vm465, %v531, 0.0
        %548 = vadd.xlane.f32.xlu0 %v547
        %v549 = vpop.xlane.xlu0 %548
        %v550 = vsel %vm465, %v532, 0.0
        %551 = vadd.xlane.f32.xlu0 %v550
        %v552 = vpop.xlane.xlu0 %551
        %v553 = vsel %vm465, %v533, 0.0
        %554 = vadd.xlane.f32.xlu0 %v553
        %v555 = vpop.xlane.xlu0 %554
        %v556 = vsel %vm465, %v534, 0.0
        %557 = vadd.xlane.f32.xlu0 %v556
        %v558 = vpop.xlane.xlu0 %557
        %v559 = vsel %vm465, %v535, 0.0
        %560 = vadd.xlane.f32.xlu0 %v559
        %v561 = vpop.xlane.xlu0 %560
        %v562 = vsel %vm465, %v536, 0.0
        %563 = vadd.xlane.f32.xlu0 %v562
        %v564 = vpop.xlane.xlu0 %563
        %v565 = vsel %vm465, %v537, 0.0
        %566 = vadd.xlane.f32.xlu0 %v565
        %v567 = vpop.xlane.xlu0 %566
        %v568 = vsel %vm465, %v538, 0.0
        %569 = vadd.xlane.f32.xlu0 %v568
        %v570 = vpop.xlane.xlu0 %569
        %v571 = vsel %vm465, %v539, 0.0
        %572 = vadd.xlane.f32.xlu0 %v571
        %v573 = vpop.xlane.xlu0 %572
        %v574 = vsel %vm465, %v540, 0.0
        %575 = vadd.xlane.f32.xlu0 %v574
        %v576 = vpop.xlane.xlu0 %575
        %v577 = vsel %vm465, %v541, 0.0
        %578 = vadd.xlane.f32.xlu0 %v577
        %v579 = vpop.xlane.xlu0 %578
        %v580 = vsel %vm465, %v542, 0.0
        %581 = vadd.xlane.f32.xlu0 %v580
        %v582 = vpop.xlane.xlu0 %581
        %v583 = vsel %vm465, %v543, 0.0
        %584 = vadd.xlane.f32.xlu0 %v583
        %v585 = vpop.xlane.xlu0 %584
        %v586 = vsel %vm465, %v544, 0.0
        %587 = vadd.xlane.f32.xlu0 %v586
        %v588 = vpop.xlane.xlu0 %587
        %v589 = vsel %vm465, %v545, 0.0
        %590 = vadd.xlane.f32.xlu0 %v589
        %v591 = vpop.xlane.xlu0 %590
        %v592 = vsel %vm465, %v546, 0.0
        %593 = vadd.xlane.f32.xlu0 %v592
        %v594 = vpop.xlane.xlu0 %593
        %v595 = vmul.f32 %v549, %v514
        %v596 = vmul.f32 %v552, %v514
        %v597 = vmul.f32 %v555, %v514
        %v598 = vmul.f32 %v558, %v514
        %v599 = vmul.f32 %v561, %v514
        %v600 = vmul.f32 %v564, %v514
        %v601 = vmul.f32 %v567, %v514
        %v602 = vmul.f32 %v570, %v514
        %v603 = vmul.f32 %v573, %v514
        %v604 = vmul.f32 %v576, %v514
        %v605 = vmul.f32 %v579, %v514
        %v606 = vmul.f32 %v582, %v514
        %v607 = vmul.f32 %v585, %v514
        %v608 = vmul.f32 %v588, %v514
        %v609 = vmul.f32 %v591, %v514
        %v610 = vmul.f32 %v594, %v514
        %v611 = vmul.f32 %v515, %v515
        %v612 = vmul.f32 %v516, %v516
        %v613 = vmul.f32 %v517, %v517
        %v614 = vmul.f32 %v518, %v518
        %v615 = vmul.f32 %v519, %v519
        %v616 = vmul.f32 %v520, %v520
        %v617 = vmul.f32 %v521, %v521
        %v618 = vmul.f32 %v522, %v522
        %v619 = vmul.f32 %v523, %v523
        %v620 = vmul.f32 %v524, %v524
        %v621 = vmul.f32 %v525, %v525
        %v622 = vmul.f32 %v526, %v526
        %v623 = vmul.f32 %v527, %v527
        %v624 = vmul.f32 %v528, %v528
        %v625 = vmul.f32 %v529, %v529
        %v626 = vmul.f32 %v530, %v530
        %v627 = vsub.f32 %v595, %v611
        %v628 = vsub.f32 %v596, %v612
        %v629 = vsub.f32 %v597, %v613
        %v630 = vsub.f32 %v598, %v614
        %v631 = vsub.f32 %v599, %v615
        %v632 = vsub.f32 %v600, %v616
        %v633 = vsub.f32 %v601, %v617
        %v634 = vsub.f32 %v602, %v618
        %v635 = vsub.f32 %v603, %v619
        %v636 = vsub.f32 %v604, %v620
        %v637 = vsub.f32 %v605, %v621
        %v638 = vsub.f32 %v606, %v622
        %v639 = vsub.f32 %v607, %v623
        %v640 = vsub.f32 %v608, %v624
        %v641 = vsub.f32 %v609, %v625
        %v642 = vsub.f32 %v610, %v626
        %v643 = vsub.f32 %v449, %v515
        %v644 = vsub.f32 %v450, %v516
        %v645 = vsub.f32 %v451, %v517
        %v646 = vsub.f32 %v452, %v518
        %v647 = vsub.f32 %v453, %v519
        %v648 = vsub.f32 %v454, %v520
        %v649 = vsub.f32 %v455, %v521
        %v650 = vsub.f32 %v456, %v522
        %v651 = vsub.f32 %v457, %v523
        %v652 = vsub.f32 %v458, %v524
        %v653 = vsub.f32 %v459, %v525
        %v654 = vsub.f32 %v460, %v526
        %v655 = vsub.f32 %v461, %v527
        %v656 = vsub.f32 %v462, %v528
        %v657 = vsub.f32 %v463, %v529
        %v658 = vsub.f32 %v464, %v530
        %v659 = vadd.f32 %v627, 1e-05
        %v660 = vadd.f32 %v628, 1e-05
        %v661 = vadd.f32 %v629, 1e-05
        %v662 = vadd.f32 %v630, 1e-05
        %v663 = vadd.f32 %v631, 1e-05
        %v664 = vadd.f32 %v632, 1e-05
        %v665 = vadd.f32 %v633, 1e-05
        %v666 = vadd.f32 %v634, 1e-05
        %v667 = vadd.f32 %v635, 1e-05
        %v668 = vadd.f32 %v636, 1e-05
        %v669 = vadd.f32 %v637, 1e-05
        %v670 = vadd.f32 %v638, 1e-05
        %v671 = vadd.f32 %v639, 1e-05
        %v672 = vadd.f32 %v640, 1e-05
        %v673 = vadd.f32 %v641, 1e-05
        %v674 = vadd.f32 %v642, 1e-05
        %v675 = vrsqrt.pop %v659
        %v676 = vrsqrt.pop %v660
        %v677 = vrsqrt.pop %v661
        %v678 = vrsqrt.pop %v662
        %v679 = vrsqrt.pop %v663
        %v680 = vrsqrt.pop %v664
        %v681 = vrsqrt.pop %v665
        %v682 = vrsqrt.pop %v666
        %v683 = vrsqrt.pop %v667
        %v684 = vrsqrt.pop %v668
        %v685 = vrsqrt.pop %v669
        %v686 = vrsqrt.pop %v670
        %v687 = vrsqrt.pop %v671
        %v688 = vrsqrt.pop %v672
        %v689 = vrsqrt.pop %v673
        %v690 = vrsqrt.pop %v674
        %v691 = vmul.f32 %v643, %v675
        %v692 = vmul.f32 %v644, %v676
        %v693 = vmul.f32 %v645, %v677
        %v694 = vmul.f32 %v646, %v678
        %v695 = vmul.f32 %v647, %v679
        %v696 = vmul.f32 %v648, %v680
        %v697 = vmul.f32 %v649, %v681
        %v698 = vmul.f32 %v650, %v682
        %v699 = vmul.f32 %v651, %v683
        %v700 = vmul.f32 %v652, %v684
        %v701 = vmul.f32 %v653, %v685
        %v702 = vmul.f32 %v654, %v686
        %v703 = vmul.f32 %v655, %v687
        %v704 = vmul.f32 %v656, %v688
        %v705 = vmul.f32 %v657, %v689
        %v706 = vmul.f32 %v658, %v690
        %v707 = vld [vmem:[%s1] sm:$0x1]
        %v709 = vlaneseq
        %v710 = vshrl.u32 %v709, 7
        %v711 = vsub.s32 0, %v710
        %v712 = vrot.slane %v707, %v711
        %v714 = vmul.f32 %v691, %v712
        %v715 = vmul.f32 %v692, %v712
        %v716 = vmul.f32 %v693, %v712
        %v717 = vmul.f32 %v694, %v712
        %v718 = vmul.f32 %v695, %v712
        %v719 = vmul.f32 %v696, %v712
        %v720 = vmul.f32 %v697, %v712
        %v721 = vmul.f32 %v698, %v712
        %v722 = vmul.f32 %v699, %v712
        %v723 = vmul.f32 %v700, %v712
        %v724 = vmul.f32 %v701, %v712
        %v725 = vmul.f32 %v702, %v712
        %v726 = vmul.f32 %v703, %v712
        %v727 = vmul.f32 %v704, %v712
        %v728 = vmul.f32 %v705, %v712
        %v729 = vmul.f32 %v706, %v712
        %v730 = vld [vmem:[%s2] sm:$0x1]
        %v732 = vlaneseq
        %v733 = vshrl.u32 %v732, 7
        %v734 = vsub.s32 0, %v733
        %v735 = vrot.slane %v730, %v734
        %v737 = vadd.f32 %v714, %v735
        %v738 = vadd.f32 %v715, %v735
        %v739 = vadd.f32 %v716, %v735
        %v740 = vadd.f32 %v717, %v735
        %v741 = vadd.f32 %v718, %v735
        %v742 = vadd.f32 %v719, %v735
        %v743 = vadd.f32 %v720, %v735
        %v744 = vadd.f32 %v721, %v735
        %v745 = vadd.f32 %v722, %v735
        %v746 = vadd.f32 %v723, %v735
        %v747 = vadd.f32 %v724, %v735
        %v748 = vadd.f32 %v725, %v735
        %v749 = vadd.f32 %v726, %v735
        %v750 = vadd.f32 %v727, %v735
        %v751 = vadd.f32 %v728, %v735
        %v752 = vadd.f32 %v729, %v735
        %v753 = vld [vmem:[%s3] sm:$0xff]
        %v754 = vld [vmem:[%s3 + $0x8] sm:$0xff]
        %v755 = vld [vmem:[%s3 + $0x10] sm:$0xff]
        %v756 = vld [vmem:[%s3 + $0x18] sm:$0xff]
        %v757 = vld [vmem:[%s3 + $0x20] sm:$0xff]
        %v758 = vld [vmem:[%s3 + $0x28] sm:$0xff]
        %v759 = vld [vmem:[%s3 + $0x30] sm:$0xff]
        %v760 = vld [vmem:[%s3 + $0x38] sm:$0xff]
        %v761 = vld [vmem:[%s4] sm:$0x1]
        %v763 = vlaneseq
        %v764 = vshrl.u32 %v763, 7
        %v765 = vsub.s32 0, %v764
        %v766 = vrot.slane %v761, %v765
        %v769 = vsel %vm465, %v737, 0
        %v772 = vsel %vm465, %v738, 0
        %v775 = vsel %vm465, %v739, 0
        %v778 = vsel %vm465, %v740, 0
        %v781 = vsel %vm465, %v741, 0
        %v784 = vsel %vm465, %v742, 0
        %v787 = vsel %vm465, %v743, 0
        %v790 = vsel %vm465, %v744, 0
        %v793 = vsel %vm465, %v745, 0
        %v796 = vsel %vm465, %v746, 0
        %v799 = vsel %vm465, %v747, 0
        %v802 = vsel %vm465, %v748, 0
        %v805 = vsel %vm465, %v749, 0
        %v808 = vsel %vm465, %v750, 0
        %v811 = vsel %vm465, %v751, 0
        %v814 = vsel %vm465, %v752, 0
        %816 = vmatprep.subr.mxu0 0.0
        %817 = vmatpush1.msra.mxu0 %v753
        %818 = vmatprep.subr.mxu0 0.0
        %819 = vmatpush1.msra.mxu0 %v754
        %820 = vmatprep.subr.mxu0 0.0
        %821 = vmatpush1.msra.mxu0 %v755
        %822 = vmatprep.subr.mxu0 0.0
        %823 = vmatpush1.msra.mxu0 %v756
        %824 = vmatprep.subr.mxu0 0.0
        %825 = vmatpush1.msra.mxu0 %v757
        %826 = vmatprep.subr.mxu0 0.0
        %827 = vmatpush1.msra.mxu0 %v758
        %828 = vmatprep.subr.mxu0 0.0
        %829 = vmatpush1.msra.mxu0 %v759
        %830 = vmatprep.subr.mxu0 0.0
        %831 = vmatpush1.msra.mxu0 %v760
        %832 = vmatprep.subr.mxu0 0.0
        %833 = vmatpush1.msra.mxu0 0.0
        %834 = vmatprep.subr.mxu0 0.0
        %835 = vmatpush1.msra.mxu0 0.0
        %836 = vmatprep.subr.mxu0 0.0
        %837 = vmatpush1.msra.mxu0 0.0
        %838 = vmatprep.subr.mxu0 0.0
        %839 = vmatpush1.msra.mxu0 0.0
        %840 = vmatprep.subr.mxu0 0.0
        %841 = vmatpush1.msra.mxu0 0.0
        %842 = vmatprep.subr.mxu0 0.0
        %843 = vmatpush1.msra.mxu0 0.0
        %844 = vmatprep.subr.mxu0 0.0
        %845 = vmatpush1.msra.mxu0 0.0
        %846 = vmatprep.subr.mxu0 0.0
        %847 = vmatpush1.msra.mxu0 0.0
        %848 = vmatprep.subr.mxu0 0.0
        %849 = vmatpush1.msra.mxu0 0.0
        %850 = vmatprep.subr.mxu0 0.0
        %851 = vmatpush1.msra.mxu0 0.0
        %852 = vmatprep.subr.mxu0 0.0
        %853 = vmatpush1.msra.mxu0 0.0
        %854 = vmatprep.subr.mxu0 0.0
        %855 = vmatpush1.msra.mxu0 0.0
        %856 = vmatprep.subr.mxu0 0.0
        %857 = vmatpush1.msra.mxu0 0.0
        %858 = vmatprep.subr.mxu0 0.0
        %859 = vmatpush1.msra.mxu0 0.0
        %860 = vmatprep.subr.mxu0 0.0
        %861 = vmatpush1.msra.mxu0 0.0
        %862 = vmatprep.subr.mxu0 0.0
        %863 = vmatpush1.msra.mxu0 0.0
        %864 = vmatprep.subr.mxu0 0.0
        %865 = vmatpush1.msra.mxu0 0.0
        %866 = vmatprep.subr.mxu0 0.0
        %867 = vmatpush1.msra.mxu0 0.0
        %868 = vmatprep.subr.mxu0 0.0
        %869 = vmatpush1.msra.mxu0 0.0
        %870 = vmatprep.subr.mxu0 0.0
        %871 = vmatpush1.msra.mxu0 0.0
        %872 = vmatprep.subr.mxu0 0.0
        %873 = vmatpush1.msra.mxu0 0.0
        %874 = vmatprep.subr.mxu0 0.0
        %875 = vmatpush1.msra.mxu0 0.0
        %876 = vmatprep.subr.mxu0 0.0
        %877 = vmatpush1.msra.mxu0 0.0
        %878 = vmatprep.subr.mxu0 0.0
        %879 = vmatpush1.msra.mxu0 0.0
        %880 = vmatprep.mubr.f32.mxu0 0.0
        %881 = vmatmul.mubr.f32.gmra.mrb[0].mxu0 %v769
        %v882 = vpop.f32.mrb[0].mxu0
        %v883 = vadd.f32 %v766, %v882
        %v884 = vpop.f32.mrb[0].mxu0
        %885 = vmatprep.mubr.f32.mxu0 0.0
        %886 = vmatmul.mubr.f32.gmra.mrb[0].mxu0 %v772
        %v887 = vpop.f32.mrb[0].mxu0
        %v888 = vadd.f32 %v766, %v887
        %v889 = vpop.f32.mrb[0].mxu0
        %890 = vmatprep.mubr.f32.mxu0 0.0
        %891 = vmatmul.mubr.f32.gmra.mrb[0].mxu0 %v775
        %v892 = vpop.f32.mrb[0].mxu0
        %v893 = vadd.f32 %v766, %v892
        %v894 = vpop.f32.mrb[0].mxu0
        %895 = vmatprep.mubr.f32.mxu0 0.0
        %896 = vmatmul.mubr.f32.gmra.mrb[0].mxu0 %v778
        %v897 = vpop.f32.mrb[0].mxu0
        %v898 = vadd.f32 %v766, %v897
        %v899 = vpop.f32.mrb[0].mxu0
        %900 = vmatprep.mubr.f32.mxu0 0.0
        %901 = vmatmul.mubr.f32.gmra.mrb[0].mxu0 %v781
        %v902 = vpop.f32.mrb[0].mxu0
        %v903 = vadd.f32 %v766, %v902
        %v904 = vpop.f32.mrb[0].mxu0
        %905 = vmatprep.mubr.f32.mxu0 0.0
        %906 = vmatmul.mubr.f32.gmra.mrb[0].mxu0 %v784
        %v907 = vpop.f32.mrb[0].mxu0
        %v908 = vadd.f32 %v766, %v907
        %v909 = vpop.f32.mrb[0].mxu0
        %910 = vmatprep.mubr.f32.mxu0 0.0
        %911 = vmatmul.mubr.f32.gmra.mrb[0].mxu0 %v787
        %v912 = vpop.f32.mrb[0].mxu0
        %v913 = vadd.f32 %v766, %v912
        %v914 = vpop.f32.mrb[0].mxu0
        %915 = vmatprep.mubr.f32.mxu0 0.0
        %916 = vmatmul.mubr.f32.gmra.mrb[0].mxu0 %v790
        %v917 = vpop.f32.mrb[0].mxu0
        %v918 = vadd.f32 %v766, %v917
        %v919 = vpop.f32.mrb[0].mxu0
        %920 = vmatprep.mubr.f32.mxu0 0.0
        %921 = vmatmul.mubr.f32.gmra.mrb[0].mxu0 %v793
        %v922 = vpop.f32.mrb[0].mxu0
        %v923 = vadd.f32 %v766, %v922
        %v924 = vpop.f32.mrb[0].mxu0
        %925 = vmatprep.mubr.f32.mxu0 0.0
        %926 = vmatmul.mubr.f32.gmra.mrb[0].mxu0 %v796
        %v927 = vpop.f32.mrb[0].mxu0
        %v928 = vadd.f32 %v766, %v927
        %v929 = vpop.f32.mrb[0].mxu0
        %930 = vmatprep.mubr.f32.mxu0 0.0
        %931 = vmatmul.mubr.f32.gmra.mrb[0].mxu0 %v799
        %v932 = vpop.f32.mrb[0].mxu0
        %v933 = vadd.f32 %v766, %v932
        %v934 = vpop.f32.mrb[0].mxu0
        %935 = vmatprep.mubr.f32.mxu0 0.0
        %936 = vmatmul.mubr.f32.gmra.mrb[0].mxu0 %v802
        %v937 = vpop.f32.mrb[0].mxu0
        %v938 = vadd.f32 %v766, %v937
        %v939 = vpop.f32.mrb[0].mxu0
        %940 = vmatprep.mubr.f32.mxu0 0.0
        %941 = vmatmul.mubr.f32.gmra.mrb[0].mxu0 %v805
        %v942 = vpop.f32.mrb[0].mxu0
        %v943 = vadd.f32 %v766, %v942
        %v944 = vpop.f32.mrb[0].mxu0
        %945 = vmatprep.mubr.f32.mxu0 0.0
        %946 = vmatmul.mubr.f32.gmra.mrb[0].mxu0 %v808
        %v947 = vpop.f32.mrb[0].mxu0
        %v948 = vadd.f32 %v766, %v947
        %v949 = vpop.f32.mrb[0].mxu0
        %950 = vmatprep.mubr.f32.mxu0 0.0
        %951 = vmatmul.mubr.f32.gmra.mrb[0].mxu0 %v811
        %v952 = vpop.f32.mrb[0].mxu0
        %v953 = vadd.f32 %v766, %v952
        %v954 = vpop.f32.mrb[0].mxu0
        %955 = vmatprep.mubr.f32.mxu0 0.0
        %956 = vmatmul.mubr.f32.gmra.mrb[0].mxu0 %v814
        %v957 = vpop.f32.mrb[0].mxu0
        %v958 = vadd.f32 %v766, %v957
        %v959 = vpop.f32.mrb[0].mxu0
        %960 = vdwg.mxu0
        %v961 = vld [vmem:[%s5] sm:$0xff]
        %v962 = vld [vmem:[%s5 + $0x8] sm:$0xff]
        %v963 = vld [vmem:[%s5 + $0x10] sm:$0xff]
        %v964 = vld [vmem:[%s5 + $0x18] sm:$0xff]
        %v965 = vld [vmem:[%s5 + $0x20] sm:$0xff]
        %v966 = vld [vmem:[%s5 + $0x28] sm:$0xff]
        %v967 = vld [vmem:[%s5 + $0x30] sm:$0xff]
        %v968 = vld [vmem:[%s5 + $0x38] sm:$0xff]
        %v969 = vld [vmem:[%s6] sm:$0x1]
        %v971 = vlaneseq
        %v972 = vshrl.u32 %v971, 7
        %v973 = vsub.s32 0, %v972
        %v974 = vrot.slane %v969, %v973
        %v977 = vsel %vm465, %v883, 0
        %v980 = vsel %vm465, %v888, 0
        %v983 = vsel %vm465, %v893, 0
        %v986 = vsel %vm465, %v898, 0
        %v989 = vsel %vm465, %v903, 0
        %v992 = vsel %vm465, %v908, 0
        %v995 = vsel %vm465, %v913, 0
        %v998 = vsel %vm465, %v918, 0
        %v1001 = vsel %vm465, %v923, 0
        %v1004 = vsel %vm465, %v928, 0
        %v1007 = vsel %vm465, %v933, 0
        %v1010 = vsel %vm465, %v938, 0
        %v1013 = vsel %vm465, %v943, 0
        %v1016 = vsel %vm465, %v948, 0
        %v1019 = vsel %vm465, %v953, 0
        %v1022 = vsel %vm465, %v958, 0
        %1024 = vmatprep.subr.mxu0 0.0
        %1025 = vmatpush1.msra.mxu0 %v961
        %1026 = vmatprep.subr.mxu0 0.0
        %1027 = vmatpush1.msra.mxu0 %v962
        %1028 = vmatprep.subr.mxu0 0.0
        %1029 = vmatpush1.msra.mxu0 %v963
        %1030 = vmatprep.subr.mxu0 0.0
        %1031 = vmatpush1.msra.mxu0 %v964
        %1032 = vmatprep.subr.mxu0 0.0
        %1033 = vmatpush1.msra.mxu0 %v965
        %1034 = vmatprep.subr.mxu0 0.0
        %1035 = vmatpush1.msra.mxu0 %v966
        %1036 = vmatprep.subr.mxu0 0.0
        %1037 = vmatpush1.msra.mxu0 %v967
        %1038 = vmatprep.subr.mxu0 0.0
        %1039 = vmatpush1.msra.mxu0 %v968
        %1040 = vmatprep.subr.mxu0 0.0
        %1041 = vmatpush1.msra.mxu0 0.0
        %1042 = vmatprep.subr.mxu0 0.0
        %1043 = vmatpush1.msra.mxu0 0.0
        %1044 = vmatprep.subr.mxu0 0.0
        %1045 = vmatpush1.msra.mxu0 0.0
        %1046 = vmatprep.subr.mxu0 0.0
        %1047 = vmatpush1.msra.mxu0 0.0
        %1048 = vmatprep.subr.mxu0 0.0
        %1049 = vmatpush1.msra.mxu0 0.0
        %1050 = vmatprep.subr.mxu0 0.0
        %1051 = vmatpush1.msra.mxu0 0.0
        %1052 = vmatprep.subr.mxu0 0.0
        %1053 = vmatpush1.msra.mxu0 0.0
        %1054 = vmatprep.subr.mxu0 0.0
        %1055 = vmatpush1.msra.mxu0 0.0
        %1056 = vmatprep.subr.mxu0 0.0
        %1057 = vmatpush1.msra.mxu0 0.0
        %1058 = vmatprep.subr.mxu0 0.0
        %1059 = vmatpush1.msra.mxu0 0.0
        %1060 = vmatprep.subr.mxu0 0.0
        %1061 = vmatpush1.msra.mxu0 0.0
        %1062 = vmatprep.subr.mxu0 0.0
        %1063 = vmatpush1.msra.mxu0 0.0
        %1064 = vmatprep.subr.mxu0 0.0
        %1065 = vmatpush1.msra.mxu0 0.0
        %1066 = vmatprep.subr.mxu0 0.0
        %1067 = vmatpush1.msra.mxu0 0.0
        %1068 = vmatprep.subr.mxu0 0.0
        %1069 = vmatpush1.msra.mxu0 0.0
        %1070 = vmatprep.subr.mxu0 0.0
        %1071 = vmatpush1.msra.mxu0 0.0
        %1072 = vmatprep.subr.mxu0 0.0
        %1073 = vmatpush1.msra.mxu0 0.0
        %1074 = vmatprep.subr.mxu0 0.0
        %1075 = vmatpush1.msra.mxu0 0.0
        %1076 = vmatprep.subr.mxu0 0.0
        %1077 = vmatpush1.msra.mxu0 0.0
        %1078 = vmatprep.subr.mxu0 0.0
        %1079 = vmatpush1.msra.mxu0 0.0
        %1080 = vmatprep.subr.mxu0 0.0
        %1081 = vmatpush1.msra.mxu0 0.0
        %1082 = vmatprep.subr.mxu0 0.0
        %1083 = vmatpush1.msra.mxu0 0.0
        %1084 = vmatprep.subr.mxu0 0.0
        %1085 = vmatpush1.msra.mxu0 0.0
        %1086 = vmatprep.subr.mxu0 0.0
        %1087 = vmatpush1.msra.mxu0 0.0
        %1088 = vmatprep.mubr.f32.mxu0 0.0
        %1089 = vmatmul.mubr.f32.gmra.mrb[0].mxu0 %v977
        %v1090 = vpop.f32.mrb[0].mxu0
        %v1091 = vadd.f32 %v974, %v1090
        %v1092 = vpop.f32.mrb[0].mxu0
        %1093 = vmatprep.mubr.f32.mxu0 0.0
        %1094 = vmatmul.mubr.f32.gmra.mrb[0].mxu0 %v980
        %v1095 = vpop.f32.mrb[0].mxu0
        %v1096 = vadd.f32 %v974, %v1095
        %v1097 = vpop.f32.mrb[0].mxu0
        %1098 = vmatprep.mubr.f32.mxu0 0.0
        %1099 = vmatmul.mubr.f32.gmra.mrb[0].mxu0 %v983
        %v1100 = vpop.f32.mrb[0].mxu0
        %v1101 = vadd.f32 %v974, %v1100
        %v1102 = vpop.f32.mrb[0].mxu0
        %1103 = vmatprep.mubr.f32.mxu0 0.0
        %1104 = vmatmul.mubr.f32.gmra.mrb[0].mxu0 %v986
        %v1105 = vpop.f32.mrb[0].mxu0
        %v1106 = vadd.f32 %v974, %v1105
        %v1107 = vpop.f32.mrb[0].mxu0
        %1108 = vmatprep.mubr.f32.mxu0 0.0
        %1109 = vmatmul.mubr.f32.gmra.mrb[0].mxu0 %v989
        %v1110 = vpop.f32.mrb[0].mxu0
        %v1111 = vadd.f32 %v974, %v1110
        %v1112 = vpop.f32.mrb[0].mxu0
        %1113 = vmatprep.mubr.f32.mxu0 0.0
        %1114 = vmatmul.mubr.f32.gmra.mrb[0].mxu0 %v992
        %v1115 = vpop.f32.mrb[0].mxu0
        %v1116 = vadd.f32 %v974, %v1115
        %v1117 = vpop.f32.mrb[0].mxu0
        %1118 = vmatprep.mubr.f32.mxu0 0.0
        %1119 = vmatmul.mubr.f32.gmra.mrb[0].mxu0 %v995
        %v1120 = vpop.f32.mrb[0].mxu0
        %v1121 = vadd.f32 %v974, %v1120
        %v1122 = vpop.f32.mrb[0].mxu0
        %1123 = vmatprep.mubr.f32.mxu0 0.0
        %1124 = vmatmul.mubr.f32.gmra.mrb[0].mxu0 %v998
        %v1125 = vpop.f32.mrb[0].mxu0
        %v1126 = vadd.f32 %v974, %v1125
        %v1127 = vpop.f32.mrb[0].mxu0
        %1128 = vmatprep.mubr.f32.mxu0 0.0
        %1129 = vmatmul.mubr.f32.gmra.mrb[0].mxu0 %v1001
        %v1130 = vpop.f32.mrb[0].mxu0
        %v1131 = vadd.f32 %v974, %v1130
        %v1132 = vpop.f32.mrb[0].mxu0
        %1133 = vmatprep.mubr.f32.mxu0 0.0
        %1134 = vmatmul.mubr.f32.gmra.mrb[0].mxu0 %v1004
        %v1135 = vpop.f32.mrb[0].mxu0
        %v1136 = vadd.f32 %v974, %v1135
        %v1137 = vpop.f32.mrb[0].mxu0
        %1138 = vmatprep.mubr.f32.mxu0 0.0
        %1139 = vmatmul.mubr.f32.gmra.mrb[0].mxu0 %v1007
        %v1140 = vpop.f32.mrb[0].mxu0
        %v1141 = vadd.f32 %v974, %v1140
        %v1142 = vpop.f32.mrb[0].mxu0
        %1143 = vmatprep.mubr.f32.mxu0 0.0
        %1144 = vmatmul.mubr.f32.gmra.mrb[0].mxu0 %v1010
        %v1145 = vpop.f32.mrb[0].mxu0
        %v1146 = vadd.f32 %v974, %v1145
        %v1147 = vpop.f32.mrb[0].mxu0
        %1148 = vmatprep.mubr.f32.mxu0 0.0
        %1149 = vmatmul.mubr.f32.gmra.mrb[0].mxu0 %v1013
        %v1150 = vpop.f32.mrb[0].mxu0
        %v1151 = vadd.f32 %v974, %v1150
        %v1152 = vpop.f32.mrb[0].mxu0
        %1153 = vmatprep.mubr.f32.mxu0 0.0
        %1154 = vmatmul.mubr.f32.gmra.mrb[0].mxu0 %v1016
        %v1155 = vpop.f32.mrb[0].mxu0
        %v1156 = vadd.f32 %v974, %v1155
        %v1157 = vpop.f32.mrb[0].mxu0
        %1158 = vmatprep.mubr.f32.mxu0 0.0
        %1159 = vmatmul.mubr.f32.gmra.mrb[0].mxu0 %v1019
        %v1160 = vpop.f32.mrb[0].mxu0
        %v1161 = vadd.f32 %v974, %v1160
        %v1162 = vpop.f32.mrb[0].mxu0
        %1163 = vmatprep.mubr.f32.mxu0 0.0
        %1164 = vmatmul.mubr.f32.gmra.mrb[0].mxu0 %v1022
        %v1165 = vpop.f32.mrb[0].mxu0
        %v1166 = vadd.f32 %v974, %v1165
        %v1167 = vpop.f32.mrb[0].mxu0
        %1168 = vdwg.mxu0
        %1169 = vrot.lane.b32.xlu0 %v883, 64
        %v1170 = vpop.permute.xlu0 %1169
        %1171 = vrot.lane.b32.xlu0 %v888, 64
        %v1172 = vpop.permute.xlu0 %1171
        %1173 = vrot.lane.b32.xlu0 %v893, 64
        %v1174 = vpop.permute.xlu0 %1173
        %1175 = vrot.lane.b32.xlu0 %v898, 64
        %v1176 = vpop.permute.xlu0 %1175
        %1177 = vrot.lane.b32.xlu0 %v903, 64
        %v1178 = vpop.permute.xlu0 %1177
        %1179 = vrot.lane.b32.xlu0 %v908, 64
        %v1180 = vpop.permute.xlu0 %1179
        %1181 = vrot.lane.b32.xlu0 %v913, 64
        %v1182 = vpop.permute.xlu0 %1181
        %1183 = vrot.lane.b32.xlu0 %v918, 64
        %v1184 = vpop.permute.xlu0 %1183
        %1185 = vrot.lane.b32.xlu0 %v923, 64
        %v1186 = vpop.permute.xlu0 %1185
        %1187 = vrot.lane.b32.xlu0 %v928, 64
        %v1188 = vpop.permute.xlu0 %1187
        %1189 = vrot.lane.b32.xlu0 %v933, 64
        %v1190 = vpop.permute.xlu0 %1189
        %1191 = vrot.lane.b32.xlu0 %v938, 64
        %v1192 = vpop.permute.xlu0 %1191
        %1193 = vrot.lane.b32.xlu0 %v943, 64
        %v1194 = vpop.permute.xlu0 %1193
        %1195 = vrot.lane.b32.xlu0 %v948, 64
        %v1196 = vpop.permute.xlu0 %1195
        %1197 = vrot.lane.b32.xlu0 %v953, 64
        %v1198 = vpop.permute.xlu0 %1197
        %1199 = vrot.lane.b32.xlu0 %v958, 64
        %v1200 = vpop.permute.xlu0 %1199
        %v1201 = vsel %vm465, %v1170, 0
        %v1203 = vsel %vm465, %v1172, 0
        %v1205 = vsel %vm465, %v1174, 0
        %v1207 = vsel %vm465, %v1176, 0
        %v1209 = vsel %vm465, %v1178, 0
        %v1211 = vsel %vm465, %v1180, 0
        %v1213 = vsel %vm465, %v1182, 0
        %v1215 = vsel %vm465, %v1184, 0
        %v1217 = vsel %vm465, %v1186, 0
        %v1219 = vsel %vm465, %v1188, 0
        %v1221 = vsel %vm465, %v1190, 0
        %v1223 = vsel %vm465, %v1192, 0
        %v1225 = vsel %vm465, %v1194, 0
        %v1227 = vsel %vm465, %v1196, 0
        %v1229 = vsel %vm465, %v1198, 0
        %v1231 = vsel %vm465, %v1200, 0
        %1233 = vmatprep.subr.mxu0 0.0
        %1234 = vmatpush1.msra.mxu0 %v961
        %1235 = vmatprep.subr.mxu0 0.0
        %1236 = vmatpush1.msra.mxu0 %v962
        %1237 = vmatprep.subr.mxu0 0.0
        %1238 = vmatpush1.msra.mxu0 %v963
        %1239 = vmatprep.subr.mxu0 0.0
        %1240 = vmatpush1.msra.mxu0 %v964
        %1241 = vmatprep.subr.mxu0 0.0
        %1242 = vmatpush1.msra.mxu0 %v965
        %1243 = vmatprep.subr.mxu0 0.0
        %1244 = vmatpush1.msra.mxu0 %v966
        %1245 = vmatprep.subr.mxu0 0.0
        %1246 = vmatpush1.msra.mxu0 %v967
        %1247 = vmatprep.subr.mxu0 0.0
        %1248 = vmatpush1.msra.mxu0 %v968
        %1249 = vmatprep.subr.mxu0 0.0
        %1250 = vmatpush1.msra.mxu0 0.0
        %1251 = vmatprep.subr.mxu0 0.0
        %1252 = vmatpush1.msra.mxu0 0.0
        %1253 = vmatprep.subr.mxu0 0.0
        %1254 = vmatpush1.msra.mxu0 0.0
        %1255 = vmatprep.subr.mxu0 0.0
        %1256 = vmatpush1.msra.mxu0 0.0
        %1257 = vmatprep.subr.mxu0 0.0
        %1258 = vmatpush1.msra.mxu0 0.0
        %1259 = vmatprep.subr.mxu0 0.0
        %1260 = vmatpush1.msra.mxu0 0.0
        %1261 = vmatprep.subr.mxu0 0.0
        %1262 = vmatpush1.msra.mxu0 0.0
        %1263 = vmatprep.subr.mxu0 0.0
        %1264 = vmatpush1.msra.mxu0 0.0
        %1265 = vmatprep.subr.mxu0 0.0
        %1266 = vmatpush1.msra.mxu0 0.0
        %1267 = vmatprep.subr.mxu0 0.0
        %1268 = vmatpush1.msra.mxu0 0.0
        %1269 = vmatprep.subr.mxu0 0.0
        %1270 = vmatpush1.msra.mxu0 0.0
        %1271 = vmatprep.subr.mxu0 0.0
        %1272 = vmatpush1.msra.mxu0 0.0
        %1273 = vmatprep.subr.mxu0 0.0
        %1274 = vmatpush1.msra.mxu0 0.0
        %1275 = vmatprep.subr.mxu0 0.0
        %1276 = vmatpush1.msra.mxu0 0.0
        %1277 = vmatprep.subr.mxu0 0.0
        %1278 = vmatpush1.msra.mxu0 0.0
        %1279 = vmatprep.subr.mxu0 0.0
        %1280 = vmatpush1.msra.mxu0 0.0
        %1281 = vmatprep.subr.mxu0 0.0
        %1282 = vmatpush1.msra.mxu0 0.0
        %1283 = vmatprep.subr.mxu0 0.0
        %1284 = vmatpush1.msra.mxu0 0.0
        %1285 = vmatprep.subr.mxu0 0.0
        %1286 = vmatpush1.msra.mxu0 0.0
        %1287 = vmatprep.subr.mxu0 0.0
        %1288 = vmatpush1.msra.mxu0 0.0
        %1289 = vmatprep.subr.mxu0 0.0
        %1290 = vmatpush1.msra.mxu0 0.0
        %1291 = vmatprep.subr.mxu0 0.0
        %1292 = vmatpush1.msra.mxu0 0.0
        %1293 = vmatprep.subr.mxu0 0.0
        %1294 = vmatpush1.msra.mxu0 0.0
        %1295 = vmatprep.subr.mxu0 0.0
        %1296 = vmatpush1.msra.mxu0 0.0
        %1297 = vmatprep.mubr.f32.mxu0 0.0
        %1298 = vmatmul.mubr.f32.gmra.mrb[0].mxu0 %v1201
        %v1299 = vpop.f32.mrb[0].mxu0
        %v1300 = vadd.f32 0.0, %v1299
        %v1301 = vpop.f32.mrb[0].mxu0
        %1302 = vmatprep.mubr.f32.mxu0 0.0
        %1303 = vmatmul.mubr.f32.gmra.mrb[0].mxu0 %v1203
        %v1304 = vpop.f32.mrb[0].mxu0
        %v1305 = vadd.f32 0.0, %v1304
        %v1306 = vpop.f32.mrb[0].mxu0
        %1307 = vmatprep.mubr.f32.mxu0 0.0
        %1308 = vmatmul.mubr.f32.gmra.mrb[0].mxu0 %v1205
        %v1309 = vpop.f32.mrb[0].mxu0
        %v1310 = vadd.f32 0.0, %v1309
        %v1311 = vpop.f32.mrb[0].mxu0
        %1312 = vmatprep.mubr.f32.mxu0 0.0
        %1313 = vmatmul.mubr.f32.gmra.mrb[0].mxu0 %v1207
        %v1314 = vpop.f32.mrb[0].mxu0
        %v1315 = vadd.f32 0.0, %v1314
        %v1316 = vpop.f32.mrb[0].mxu0
        %1317 = vmatprep.mubr.f32.mxu0 0.0
        %1318 = vmatmul.mubr.f32.gmra.mrb[0].mxu0 %v1209
        %v1319 = vpop.f32.mrb[0].mxu0
        %v1320 = vadd.f32 0.0, %v1319
        %v1321 = vpop.f32.mrb[0].mxu0
        %1322 = vmatprep.mubr.f32.mxu0 0.0
        %1323 = vmatmul.mubr.f32.gmra.mrb[0].mxu0 %v1211
        %v1324 = vpop.f32.mrb[0].mxu0
        %v1325 = vadd.f32 0.0, %v1324
        %v1326 = vpop.f32.mrb[0].mxu0
        %1327 = vmatprep.mubr.f32.mxu0 0.0
        %1328 = vmatmul.mubr.f32.gmra.mrb[0].mxu0 %v1213
        %v1329 = vpop.f32.mrb[0].mxu0
        %v1330 = vadd.f32 0.0, %v1329
        %v1331 = vpop.f32.mrb[0].mxu0
        %1332 = vmatprep.mubr.f32.mxu0 0.0
        %1333 = vmatmul.mubr.f32.gmra.mrb[0].mxu0 %v1215
        %v1334 = vpop.f32.mrb[0].mxu0
        %v1335 = vadd.f32 0.0, %v1334
        %v1336 = vpop.f32.mrb[0].mxu0
        %1337 = vmatprep.mubr.f32.mxu0 0.0
        %1338 = vmatmul.mubr.f32.gmra.mrb[0].mxu0 %v1217
        %v1339 = vpop.f32.mrb[0].mxu0
        %v1340 = vadd.f32 0.0, %v1339
        %v1341 = vpop.f32.mrb[0].mxu0
        %1342 = vmatprep.mubr.f32.mxu0 0.0
        %1343 = vmatmul.mubr.f32.gmra.mrb[0].mxu0 %v1219
        %v1344 = vpop.f32.mrb[0].mxu0
        %v1345 = vadd.f32 0.0, %v1344
        %v1346 = vpop.f32.mrb[0].mxu0
        %1347 = vmatprep.mubr.f32.mxu0 0.0
        %1348 = vmatmul.mubr.f32.gmra.mrb[0].mxu0 %v1221
        %v1349 = vpop.f32.mrb[0].mxu0
        %v1350 = vadd.f32 0.0, %v1349
        %v1351 = vpop.f32.mrb[0].mxu0
        %1352 = vmatprep.mubr.f32.mxu0 0.0
        %1353 = vmatmul.mubr.f32.gmra.mrb[0].mxu0 %v1223
        %v1354 = vpop.f32.mrb[0].mxu0
        %v1355 = vadd.f32 0.0, %v1354
        %v1356 = vpop.f32.mrb[0].mxu0
        %1357 = vmatprep.mubr.f32.mxu0 0.0
        %1358 = vmatmul.mubr.f32.gmra.mrb[0].mxu0 %v1225
        %v1359 = vpop.f32.mrb[0].mxu0
        %v1360 = vadd.f32 0.0, %v1359
        %v1361 = vpop.f32.mrb[0].mxu0
        %1362 = vmatprep.mubr.f32.mxu0 0.0
        %1363 = vmatmul.mubr.f32.gmra.mrb[0].mxu0 %v1227
        %v1364 = vpop.f32.mrb[0].mxu0
        %v1365 = vadd.f32 0.0, %v1364
        %v1366 = vpop.f32.mrb[0].mxu0
        %1367 = vmatprep.mubr.f32.mxu0 0.0
        %1368 = vmatmul.mubr.f32.gmra.mrb[0].mxu0 %v1229
        %v1369 = vpop.f32.mrb[0].mxu0
        %v1370 = vadd.f32 0.0, %v1369
        %v1371 = vpop.f32.mrb[0].mxu0
        %1372 = vmatprep.mubr.f32.mxu0 0.0
        %1373 = vmatmul.mubr.f32.gmra.mrb[0].mxu0 %v1231
        %v1374 = vpop.f32.mrb[0].mxu0
        %v1375 = vadd.f32 0.0, %v1374
        %v1376 = vpop.f32.mrb[0].mxu0
        %1377 = vdwg.mxu0
        %1378 = vst.msk [vmem:[%s435] sm:$0xff] %vm465, %v883
        %1379 = vst.msk [vmem:[%s435 + $0x8] sm:$0xff] %vm465, %v888
        %1380 = vst.msk [vmem:[%s435 + $0x10] sm:$0xff] %vm465, %v893
        %1381 = vst.msk [vmem:[%s435 + $0x18] sm:$0xff] %vm465, %v898
        %1382 = vst.msk [vmem:[%s435 + $0x20] sm:$0xff] %vm465, %v903
        %1383 = vst.msk [vmem:[%s435 + $0x28] sm:$0xff] %vm465, %v908
        %1384 = vst.msk [vmem:[%s435 + $0x30] sm:$0xff] %vm465, %v913
        %1385 = vst.msk [vmem:[%s435 + $0x38] sm:$0xff] %vm465, %v918
        %1386 = vst.msk [vmem:[%s435 + $0x40] sm:$0xff] %vm465, %v923
        %1387 = vst.msk [vmem:[%s435 + $0x48] sm:$0xff] %vm465, %v928
        %1388 = vst.msk [vmem:[%s435 + $0x50] sm:$0xff] %vm465, %v933
        %1389 = vst.msk [vmem:[%s435 + $0x58] sm:$0xff] %vm465, %v938
        %1390 = vst.msk [vmem:[%s435 + $0x60] sm:$0xff] %vm465, %v943
        %1391 = vst.msk [vmem:[%s435 + $0x68] sm:$0xff] %vm465, %v948
        %1392 = vst.msk [vmem:[%s435 + $0x70] sm:$0xff] %vm465, %v953
        %1393 = vst.msk [vmem:[%s435 + $0x78] sm:$0xff] %vm465, %v958
        %1410 = vst.msk [vmem:[%s445] sm:$0xff] %vm465, %v1170
        %1411 = vst.msk [vmem:[%s445 + $0x8] sm:$0xff] %vm465, %v1172
        %1412 = vst.msk [vmem:[%s445 + $0x10] sm:$0xff] %vm465, %v1174
        %1413 = vst.msk [vmem:[%s445 + $0x18] sm:$0xff] %vm465, %v1176
        %1414 = vst.msk [vmem:[%s445 + $0x20] sm:$0xff] %vm465, %v1178
        %1415 = vst.msk [vmem:[%s445 + $0x28] sm:$0xff] %vm465, %v1180
        %1416 = vst.msk [vmem:[%s445 + $0x30] sm:$0xff] %vm465, %v1182
        %1417 = vst.msk [vmem:[%s445 + $0x38] sm:$0xff] %vm465, %v1184
        %1418 = vst.msk [vmem:[%s445 + $0x40] sm:$0xff] %vm465, %v1186
        %1419 = vst.msk [vmem:[%s445 + $0x48] sm:$0xff] %vm465, %v1188
        %1420 = vst.msk [vmem:[%s445 + $0x50] sm:$0xff] %vm465, %v1190
        %1421 = vst.msk [vmem:[%s445 + $0x58] sm:$0xff] %vm465, %v1192
        %1422 = vst.msk [vmem:[%s445 + $0x60] sm:$0xff] %vm465, %v1194
        %1423 = vst.msk [vmem:[%s445 + $0x68] sm:$0xff] %vm465, %v1196
        %1424 = vst.msk [vmem:[%s445 + $0x70] sm:$0xff] %vm465, %v1198
        %1425 = vst.msk [vmem:[%s445 + $0x78] sm:$0xff] %vm465, %v1200
        %1426 = vst [vmem:[%s409] sm:$0xff] %v1091
        %1427 = vst [vmem:[%s409 + $0x8] sm:$0xff] %v1096
        %1428 = vst [vmem:[%s409 + $0x10] sm:$0xff] %v1101
        %1429 = vst [vmem:[%s409 + $0x18] sm:$0xff] %v1106
        %1430 = vst [vmem:[%s409 + $0x20] sm:$0xff] %v1111
        %1431 = vst [vmem:[%s409 + $0x28] sm:$0xff] %v1116
        %1432 = vst [vmem:[%s409 + $0x30] sm:$0xff] %v1121
        %1433 = vst [vmem:[%s409 + $0x38] sm:$0xff] %v1126
        %1434 = vst [vmem:[%s409 + $0x40] sm:$0xff] %v1131
        %1435 = vst [vmem:[%s409 + $0x48] sm:$0xff] %v1136
        %1436 = vst [vmem:[%s409 + $0x50] sm:$0xff] %v1141
        %1437 = vst [vmem:[%s409 + $0x58] sm:$0xff] %v1146
        %1438 = vst [vmem:[%s409 + $0x60] sm:$0xff] %v1151
        %1439 = vst [vmem:[%s409 + $0x68] sm:$0xff] %v1156
        %1440 = vst [vmem:[%s409 + $0x70] sm:$0xff] %v1161
        %1441 = vst [vmem:[%s409 + $0x78] sm:$0xff] %v1166
        %1442 = vst [vmem:[%s416] sm:$0xff] %v1300
        %1443 = vst [vmem:[%s416 + $0x8] sm:$0xff] %v1305
        %1444 = vst [vmem:[%s416 + $0x10] sm:$0xff] %v1310
        %1445 = vst [vmem:[%s416 + $0x18] sm:$0xff] %v1315
        %1446 = vst [vmem:[%s416 + $0x20] sm:$0xff] %v1320
        %1447 = vst [vmem:[%s416 + $0x28] sm:$0xff] %v1325
        %1448 = vst [vmem:[%s416 + $0x30] sm:$0xff] %v1330
        %1449 = vst [vmem:[%s416 + $0x38] sm:$0xff] %v1335
        %1450 = vst [vmem:[%s416 + $0x40] sm:$0xff] %v1340
        %1451 = vst [vmem:[%s416 + $0x48] sm:$0xff] %v1345
        %1452 = vst [vmem:[%s416 + $0x50] sm:$0xff] %v1350
        %1453 = vst [vmem:[%s416 + $0x58] sm:$0xff] %v1355
        %1454 = vst [vmem:[%s416 + $0x60] sm:$0xff] %v1360
        %1455 = vst [vmem:[%s416 + $0x68] sm:$0xff] %v1365
        %1456 = vst [vmem:[%s416 + $0x70] sm:$0xff] %v1370
        %1457 = vst [vmem:[%s416 + $0x78] sm:$0xff] %v1375
        %s1458 = smul.u32 16, %s33
        %p1459 = scmp.lt.s32.totalorder %s32, 1
        %s1460 = scalar_select %p1459, %s32, 1
        %p1461 = scmp.lt.s32.totalorder %s1458, 15
        %s1462 = scalar_select %p1461, %s1458, 15
        %s1463 = smul.addr %s1460, 16
        %s1464 = sadd.s32 %s1462, %s1463
        %s1465 = smul.addr %s1464, 8
        %s1466 = scalar_lea.vmem %s7, %s1465
        %s1467 = smul.u32 16, %s33
        %p1468 = scmp.lt.s32.totalorder %s32, 1
        %s1469 = scalar_select %p1468, %s32, 1
        %p1470 = scmp.lt.s32.totalorder %s1467, 15
        %s1471 = scalar_select %p1470, %s1467, 15
        %s1472 = smul.addr %s1469, 16
        %s1473 = sadd.s32 %s1471, %s1472
        %s1474 = smul.addr %s1473, 8
        %s1475 = scalar_lea.vmem %s8, %s1474
        %s1476 = sand.u32 %s260, 1
        %s1477 = scalar_lea.sflag [#allocation3], %s1476
        %s1478 = sand.u32 %s260, 1
        %s1479 = smul.addr %s1478, 128
        %s1480 = scalar_lea.vmem [#allocation2], %s1479
        %s1481 = sand.u32 %s288, 1
        %s1482 = scalar_lea.sflag [#allocation5], %s1481
        %s1483 = sand.u32 %s288, 1
        %s1484 = smul.addr %s1483, 128
        %s1485 = scalar_lea.vmem [#allocation4], %s1484
        // Predicated region
        $region49: #{tpu_custom_call.1} parent=47 // pred_check
          %p1486 = pneg %p214
        $region50: #{tpu_custom_call.1} parent=47 // pred_check_branch
          %1488 = sbr.rel (%p1486) target = $region52
        $region51: #{tpu_custom_call.1} parent=47 // pred_region
          %s1489 = smul.u32 16, %s33
        $region52: #{tpu_custom_call.1} parent=47 // pred_fallthru
          _
        // Predicated region
        $region53: #{tpu_custom_call.1} parent=47 // pred_check
          %p1490 = pneg %p242
        $region54: #{tpu_custom_call.1} parent=47 // pred_check_branch
          %1492 = sbr.rel (%p1490) target = $region56
        $region55: #{tpu_custom_call.1} parent=47 // pred_region
          %s1493 = smul.u32 16, %s33
        $region56: #{tpu_custom_call.1} parent=47 // pred_fallthru
          _
        // Predicated region
        $region57: #{tpu_custom_call.1} parent=47 // pred_check
          %p1494 = pneg %p270
        $region58: #{tpu_custom_call.1} parent=47 // pred_check_branch
          %1496 = sbr.rel (%p1494) target = $region60
        $region59: #{tpu_custom_call.1} parent=47 // pred_region
          %s1497 = smul.u32 16, %s33
          %s1499 = ssub.s32 2048, 2048
          %1500 = vsyncadd %s1477, %s1499
          %s1501 = smul.addr %s32, 16
          %s1502 = sadd.s32 %s1497, %s1501
          %s1503 = smul.addr %s1502, 128
          %s1504 = scalar_lea.hbm %s9, %s1503
          %s1505 = sshll.u32 %s1480, 4
          %s1506 = int_to_ptr.vmem [resolvable:$true] %s1505
          %1511 = dma.vmem_to_hbm [thread:$0]  %s1506, 2048, %s1504, %s1477, 128, 128, 8
        $region60: #{tpu_custom_call.1} parent=47 // pred_fallthru
          _
        // Predicated region
        $region61: #{tpu_custom_call.1} parent=47 // pred_check
          %p1512 = pneg %p298
        $region62: #{tpu_custom_call.1} parent=47 // pred_check_branch
          %1514 = sbr.rel (%p1512) target = $region64
        $region63: #{tpu_custom_call.1} parent=47 // pred_region
          %s1515 = smul.u32 16, %s33
          %s1517 = ssub.s32 2048, 2048
          %1518 = vsyncadd %s1482, %s1517
          %s1519 = smul.addr %s32, 16
          %s1520 = sadd.s32 %s1515, %s1519
          %s1521 = smul.addr %s1520, 128
          %s1522 = scalar_lea.hbm %s10, %s1521
          %s1523 = sshll.u32 %s1485, 4
          %s1524 = int_to_ptr.vmem [resolvable:$true] %s1523
          %1529 = dma.vmem_to_hbm [thread:$0]  %s1524, 2048, %s1522, %s1482, 128, 128, 8
        $region64: #{tpu_custom_call.1} parent=47 // pred_fallthru
          _
      $region48: #{tpu_custom_call.1} parent=5 // pred_fallthru
        _
      %p1530 = scmp.le.s32.totalorder 2, %s23
      // Predicated region
      $region65: #{tpu_custom_call.1} parent=5 // pred_check
        %p1531 = pneg %p1530
      $region66: #{tpu_custom_call.1} parent=5 // pred_check_branch
        %1533 = sbr.rel (%p1531) target = $region68
      $region67: #{tpu_custom_call.1} parent=5 // pred_region
        %s1534 = ssub.s32 %s23, 2
        // Predicated region
        $region69: #{tpu_custom_call.1} parent=67 // pred_check
          %p1535 = pneg %p220
        $region70: #{tpu_custom_call.1} parent=67 // pred_check_branch
          %1537 = sbr.rel (%p1535) target = $region72
        $region71: #{tpu_custom_call.1} parent=67 // pred_region
          %s1538 = smul.u32 16, %s35
          %p1539 = scmp.lt.s32.totalorder %s34, 1
          %s1540 = scalar_select %p1539, %s34, 1
          %p1541 = scmp.lt.s32.totalorder %s1538, 15
          %s1542 = scalar_select %p1541, %s1538, 15
          %s1543 = smul.addr %s1540, 16
          %s1544 = sadd.s32 %s1542, %s1543
          %s1545 = smul.addr %s1544, 8
          %s1546 = scalar_lea.vmem %s7, %s1545
        $region72: #{tpu_custom_call.1} parent=67 // pred_fallthru
          _
        // Predicated region
        $region73: #{tpu_custom_call.1} parent=67 // pred_check
          %p1547 = pneg %p248
        $region74: #{tpu_custom_call.1} parent=67 // pred_check_branch
          %1549 = sbr.rel (%p1547) target = $region76
        $region75: #{tpu_custom_call.1} parent=67 // pred_region
          %s1550 = smul.u32 16, %s35
          %p1551 = scmp.lt.s32.totalorder %s34, 1
          %s1552 = scalar_select %p1551, %s34, 1
          %p1553 = scmp.lt.s32.totalorder %s1550, 15
          %s1554 = scalar_select %p1553, %s1550, 15
          %s1555 = smul.addr %s1552, 16
          %s1556 = sadd.s32 %s1554, %s1555
          %s1557 = smul.addr %s1556, 8
          %s1558 = scalar_lea.vmem %s8, %s1557
        $region76: #{tpu_custom_call.1} parent=67 // pred_fallthru
          _
        // Predicated region
        $region77: #{tpu_custom_call.1} parent=67 // pred_check
          %p1559 = pneg %p276
        $region78: #{tpu_custom_call.1} parent=67 // pred_check_branch
          %1561 = sbr.rel (%p1559) target = $region80
        $region79: #{tpu_custom_call.1} parent=67 // pred_region
          %s1562 = sand.u32 %s261, 1
          %s1563 = scalar_lea.sflag [#allocation3], %s1562
          %s1564 = sand.u32 %s261, 1
          %s1565 = smul.addr %s1564, 128
          %s1566 = scalar_lea.vmem [#allocation2], %s1565
          %1567 = dma.done %s1563, 2048
        $region80: #{tpu_custom_call.1} parent=67 // pred_fallthru
          _
        // Predicated region
        $region81: #{tpu_custom_call.1} parent=67 // pred_check
          %p1568 = pneg %p304
        $region82: #{tpu_custom_call.1} parent=67 // pred_check_branch
          %1570 = sbr.rel (%p1568) target = $region84
        $region83: #{tpu_custom_call.1} parent=67 // pred_region
          %s1571 = sand.u32 %s289, 1
          %s1572 = scalar_lea.sflag [#allocation5], %s1571
          %s1573 = sand.u32 %s289, 1
          %s1574 = smul.addr %s1573, 128
          %s1575 = scalar_lea.vmem [#allocation4], %s1574
          %1576 = dma.done %s1572, 2048
        $region84: #{tpu_custom_call.1} parent=67 // pred_fallthru
          _
      $region68: #{tpu_custom_call.1} parent=5 // pred_fallthru
        _
    $region6: #{tpu_custom_call.1} parent=1 // loop_footer
      %s27 = sadd.s32 1, %s23
    $region7: #{tpu_custom_call.1} parent=1 // loop_footer_branch
      %22 = sbr.rel target = $region3
    $region8: #{tpu_custom_call.1} parent=1 // loop_exit
      _
    %1577 = vsyncpa [#allocation3], 1
    %s1578 = scalar_lea.sflag [#allocation3], 1
    %1579 = vsyncpa %s1578, 1
    %1580 = vsyncpa [#allocation5], 1
    %s1581 = scalar_lea.sflag [#allocation5], 1
    %1582 = vsyncpa %s1581, 1

</llo_original>
